<compile_context>
chip_gen: v7x
topology: tpu7x:2x2x1
jax: 0.10.0
libtpu: 0.0.40
codegen_flags: <defaults>
</compile_context>

<pallas_src>
import functools
from typing import NamedTuple

import jax
import jax.numpy as jnp
from jax.experimental import pallas as pl
from jax.experimental.pallas import tpu as pltpu


def _round_up(n, m):
    return ((n + m - 1) // m) * m


def _cdiv(a, b):
    return -(-a // b)


def _silu(x):
    # silu(x) = x / (1 + exp(-x)); exp and the approximate reciprocal both execute
    # on the (otherwise idle) EUP slot, keeping the VPU free.  Kernel-only helper.
    return x * pl.reciprocal(1.0 + jnp.exp(-x), approx=True)


# ---------------------------------------------------------------------------
# Kernels
# ---------------------------------------------------------------------------

def _fused_swish_kernel(x_ref, w1_ref, b1_ref, w2_ref, b2_ref, o_ref):
    # x_ref:  (tm, K)  original dtype       w1_ref: (K, Np)  matmul dtype
    # b1_ref: (1, Np)  f32                  w2_ref: (Np, Np) matmul dtype
    # b2_ref: (1, Np)  f32                  o_ref:  (tm, Np) out dtype (lane-dense)
    x = x_ref[...].astype(w1_ref.dtype)          # in-kernel cast (free under MXU/DMA slack)
    h = jnp.dot(x, w1_ref[...], preferred_element_type=jnp.float32)
    h = _silu(h + b1_ref[...])
    y = jnp.dot(h.astype(w2_ref.dtype), w2_ref[...],
                preferred_element_type=jnp.float32)
    o_ref[...] = _silu(y + b2_ref[...]).astype(o_ref.dtype)


def _linear_silu_kernel(x_ref, w_ref, b_ref, o_ref):
    # Column-tiled Linear + SiLU used by the large-dim fallback path.
    x = x_ref[...].astype(w_ref.dtype)
    y = jnp.dot(x, w_ref[...], preferred_element_type=jnp.float32)
    o_ref[...] = _silu(y + b_ref[...]).astype(o_ref.dtype)


# ---------------------------------------------------------------------------
# Hardware-aware helpers
# ---------------------------------------------------------------------------

@functools.lru_cache(maxsize=None)
def _vmem_budget_bytes():
    """Per-generation VMEM budget: ~85% of physical, capped at 110 MiB.

    v7x (64 MiB/TC) -> ~54 MiB; v5e/v6e (128 MiB) -> ~109 MiB.
    """
    try:
        cap = int(pltpu.get_tpu_info().vmem_capacity_bytes)
    except Exception:  # conservative: assume smallest (v7x per-TC) VMEM
        cap = 64 * 1024 * 1024
    return min(int(cap * 0.85), 110 * 1024 * 1024)


@functools.lru_cache(maxsize=None)
def _buffered_one_supported():
    """Probe pl.Buffered(1) (single-buffered resident operand) with a tiny kernel.

    Only this trivial fixed-shape compile is guarded; errors from the real forward
    pass are never swallowed.
    """
    def probe(a_ref, c_ref, o_ref):
        o_ref[...] = a_ref[...] + c_ref[...]

    try:
        out = pl.pallas_call(
            probe,
            out_shape=jax.ShapeDtypeStruct((8, 128), jnp.float32),
            grid_spec=pltpu.PrefetchScalarGridSpec(
                num_scalar_prefetch=0,
                grid=(1,),
                in_specs=[pl.BlockSpec((8, 128), lambda i: (0, 0)),
                          pl.BlockSpec((8, 128), lambda i: (0, 0),
                                       pipeline_mode=pl.Buffered(1))],
                out_specs=pl.BlockSpec((8, 128), lambda i: (0, 0)),
            ),
        )(jnp.zeros((8, 128), jnp.float32), jnp.ones((8, 128), jnp.float32))
        jax.block_until_ready(out)
        return True
    except Exception:
        return False


# ---------------------------------------------------------------------------
# Parameters (padded / cast once, outside the forward pass)
# ---------------------------------------------------------------------------

class SwishBlockParams(NamedTuple):
    w1: jax.Array   # (input_dim, Np)  matmul dtype, zero-padded columns
    b1: jax.Array   # (1, Np)          f32
    w2: jax.Array   # (Np, Np)         matmul dtype, zero-padded rows/cols
    b2: jax.Array   # (1, Np)          f32
    input_dim: int
    output_dim: int


def prepare_swish_block_params(w1, b1, w2, b2, matmul_dtype=jnp.bfloat16):
    """Pad to lane-dense Np and cast to the matmul dtype ONCE.

    w1: (input_dim, output_dim), w2: (output_dim, output_dim) -- pre-transposed
    relative to torch.nn.Linear.weight.  Zero padding is exact: padded hidden
    lanes are silu(0) = 0 and padded weight rows/columns are 0.
    """
    input_dim, output_dim = int(w1.shape[0]), int(w1.shape[1])
    np_ = _round_up(output_dim, 128)
    pad_n = np_ - output_dim
    w1p = jnp.pad(w1.astype(matmul_dtype), ((0, 0), (0, pad_n)))
    w2p = jnp.pad(w2.astype(matmul_dtype), ((0, pad_n), (0, pad_n)))
    b1p = jnp.pad(b1.astype(jnp.float32).reshape(1, -1), ((0, 0), (0, pad_n)))
    b2p = jnp.pad(b2.astype(jnp.float32).reshape(1, -1), ((0, 0), (0, pad_n)))
    w1p, b1p, w2p, b2p = jax.block_until_ready((w1p, b1p, w2p, b2p))
    return SwishBlockParams(w1p, b1p, w2p, b2p, input_dim, output_dim)


# ---------------------------------------------------------------------------
# pallas_call wrappers
# ---------------------------------------------------------------------------

@functools.partial(
    jax.jit,
    static_argnames=("tm", "out_dtype", "single_buffer_weights", "vmem_limit"))
def _fused_forward(x2d, w1, b1, w2, b2, *, tm, out_dtype, single_buffer_weights,
                   vmem_limit):
    m, k = x2d.shape
    np_ = w1.shape[1]
    mm_bytes = w1.dtype.itemsize

    def const_spec(shape):
        # Weights/biases never change across the row grid -> resident in VMEM;
        # single-buffer them when this build supports it (halves their footprint).
        if single_buffer_weights:
            return pl.BlockSpec(shape, lambda i: (0, 0), pipeline_mode=pl.Buffered(1))
        return pl.BlockSpec(shape, lambda i: (0, 0))

    cost = pl.CostEstimate(
        flops=2 * m * (k * np_ + np_ * np_),
        transcendentals=4 * m * np_,
        bytes_accessed=(m * k * x2d.dtype.itemsize
                        + (k * np_ + np_ * np_) * mm_bytes + 2 * np_ * 4
                        + m * np_ * jnp.dtype(out_dtype).itemsize),
    )

    return pl.pallas_call(
        _fused_swish_kernel,
        out_shape=jax.ShapeDtypeStruct((m, np_), out_dtype),
        grid_spec=pltpu.PrefetchScalarGridSpec(
            num_scalar_prefetch=0,
            grid=(_cdiv(m, tm),),
            in_specs=[
                pl.BlockSpec((tm, k), lambda i: (i, 0)),   # ragged last tile: masked
                const_spec((k, np_)),
                const_spec((1, np_)),
                const_spec((np_, np_)),
                const_spec((1, np_)),
            ],
            out_specs=pl.BlockSpec((tm, np_), lambda i: (i, 0)),  # lane-dense store
        ),
        compiler_params=pltpu.CompilerParams(
            dimension_semantics=("parallel",),
            vmem_limit_bytes=vmem_limit,
        ),
        cost_estimate=cost,
    )(x2d, w1, b1, w2, b2)


@functools.partial(jax.jit, static_argnames=("tm", "tn", "out_dtype", "vmem_limit"))
def _linear_silu(x2d, w, b, *, tm, tn, out_dtype, vmem_limit):
    m, k = x2d.shape
    np_ = w.shape[1]
    cost = pl.CostEstimate(
        flops=2 * m * k * np_,
        transcendentals=2 * m * np_,
        bytes_accessed=(m * k * x2d.dtype.itemsize + k * np_ * w.dtype.itemsize
                        + np_ * 4 + m * np_ * jnp.dtype(out_dtype).itemsize),
    )
    return pl.pallas_call(
        _linear_silu_kernel,
        out_shape=jax.ShapeDtypeStruct((m, np_), out_dtype),
        grid_spec=pltpu.PrefetchScalarGridSpec(
            num_scalar_prefetch=0,
            grid=(_cdiv(m, tm), np_ // tn),
            in_specs=[
                pl.BlockSpec((tm, k), lambda i, j: (i, 0)),
                pl.BlockSpec((k, tn), lambda i, j: (0, j)),
                pl.BlockSpec((1, tn), lambda i, j: (0, j)),
            ],
            out_specs=pl.BlockSpec((tm, tn), lambda i, j: (i, j)),
        ),
        compiler_params=pltpu.CompilerParams(
            dimension_semantics=("parallel", "parallel"),
            vmem_limit_bytes=vmem_limit,
        ),
        cost_estimate=cost,
    )(x2d, w, b)


def _choose_tm(m, per_row_hbm, per_row_vmem, tile_vmem_budget, requested):
    if requested is not None:
        tm = int(requested)
    else:
        # Amortize ~0.35 us/step pipeline overhead: >= ~1 MiB x+out HBM traffic/step.
        tm = _cdiv(1 << 20, max(per_row_hbm, 1))
        tm = max(256, min(2048, tm))
        if m >= 1024:
            # Keep >= ~4 grid steps so v7x's two TCs each get a pipelined loop.
            tm = min(tm, max(256, _cdiv(m, 4)))
    tm = min(tm, max(16, tile_vmem_budget // max(per_row_vmem, 1)))
    tm = min(tm, m)
    return max(16, _round_up(tm, 16))


def swish_block(x, params, *, tm=None, out_dtype=None, force_tiled=False):
    """SwishBlock forward: silu(silu(x @ w1 + b1) @ w2 + b2).

    `params` comes from prepare_swish_block_params (weights pre-padded/cast).
    Matmuls use bf16 MXU inputs with f32 accumulation, so the result carries
    ~bf16 matmul precision regardless of out_dtype (default: x.dtype; pass
    jnp.bfloat16 to halve the output HBM writeback).
    """
    input_dim, output_dim = params.input_dim, params.output_dim
    np_ = params.w1.shape[1]
    batch_shape = x.shape[:-1]
    x2d = x.reshape(-1, input_dim)
    m = x2d.shape[0]

    out_dtype = jnp.dtype(out_dtype if out_dtype is not None else x.dtype)
    x_bytes = x2d.dtype.itemsize
    mm_bytes = params.w1.dtype.itemsize
    out_bytes = out_dtype.itemsize

    budget = _vmem_budget_bytes()
    single_buffer = _buffered_one_supported()
    w_buf = 1 if single_buffer else 2
    resident = w_buf * ((input_dim * np_ + np_ * np_) * mm_bytes + 2 * np_ * 4)
    # Double-buffered x / out tiles + f32 h, y intermediates, per output row.
    per_row_vmem = 2 * input_dim * x_bytes + 2 * np_ * out_bytes + 2 * np_ * 4
    per_row_hbm = input_dim * x_bytes + np_ * out_bytes

    use_fused = (not force_tiled) and (resident + 16 * per_row_vmem <= int(0.9 * budget))

    if use_fused:
        tile_budget = int(0.9 * budget) - resident
        tm_eff = _choose_tm(m, per_row_hbm, per_row_vmem, tile_budget, tm)
        est = resident + tm_eff * per_row_vmem
        vmem_limit = int(min(budget, max(32 * 1024 * 1024, int(est * 1.25))))
        y2d = _fused_forward(
            x2d, params.w1, params.b1, params.w2, params.b2,
            tm=tm_eff, out_dtype=out_dtype,
            single_buffer_weights=single_buffer, vmem_limit=vmem_limit)
    else:
        # Large-dim fallback: two column-tiled Linear+SiLU kernels (weights are
        # streamed per column tile instead of held resident in VMEM).
        # TODO(synk): also tile the contraction dim (VMEM f32 accumulator) when a
        # single (K, tn) weight tile alone exceeds the VMEM budget.
        tn = 128
        for cand in (1024, 512, 256):
            if np_ % cand == 0:
                tn = cand
                break
        while tn > 128 and 2 * max(input_dim, np_) * tn * mm_bytes > budget // 3:
            tn //= 2
        tm_eff = max(16, _round_up(min(tm or 512, m), 16))

        def tiled_limit(k, in_bytes, ob):
            est = (2 * (tm_eff * k * in_bytes + k * tn * mm_bytes + tn * 4
                        + tm_eff * tn * ob) + tm_eff * tn * 4)
            return int(min(budget, max(32 * 1024 * 1024, int(est * 1.5))))

        h = _linear_silu(x2d, params.w1, params.b1, tm=tm_eff, tn=tn,
                         out_dtype=jnp.dtype(params.w1.dtype),
                         vmem_limit=tiled_limit(input_dim, x_bytes, mm_bytes))
        y2d = _linear_silu(h, params.w2, params.b2, tm=tm_eff, tn=tn,
                           out_dtype=out_dtype,
                           vmem_limit=tiled_limit(np_, mm_bytes, out_bytes))

    if np_ != output_dim:
        y2d = y2d[:, :output_dim]
    return y2d.reshape(*batch_shape, output_dim)


# ---------------------------------------------------------------------------
# Init + pure-JAX references
# ---------------------------------------------------------------------------

def init_swish_block_params(key, input_dim, output_dim, dtype=jnp.float32):
    """Deterministic init matching torch.nn.Linear's U(-1/sqrt(fan_in), 1/sqrt(fan_in))."""
    k1, k2, k3, k4 = jax.random.split(key, 4)
    bound1 = 1.0 / (input_dim ** 0.5)
    bound2 = 1.0 / (output_dim ** 0.5)
    # Weights stored pre-transposed: (in_features, out_features).
    w1 = jax.random.uniform(k1, (input_dim, output_dim), dtype, -bound1, bound1)
    b1 = jax.random.uniform(k2, (output_dim,), dtype, -bound1, bound1)
    w2 = jax.random.uniform(k3, (output_dim, output_dim), dtype, -bound2, bound2)
    b2 = jax.random.uniform(k4, (output_dim,), dtype, -bound2, bound2)
    return w1, b1, w2, b2


def swish_block_ref_f32(x, w1, b1, w2, b2):
    h = jax.nn.silu(x @ w1 + b1)
    return jax.nn.silu(h @ w2 + b2)


def swish_block_ref_mm(x, w1, b1, w2, b2, matmul_dtype=jnp.bfloat16):
    # Same numerics as the kernel: bf16 MXU inputs, f32 accumulation / bias / SiLU.
    h = jnp.dot(x.astype(matmul_dtype), w1.astype(matmul_dtype),
                preferred_element_type=jnp.float32) + b1.astype(jnp.float32)
    h = jax.nn.silu(h)
    y = jnp.dot(h.astype(matmul_dtype), w2.astype(matmul_dtype),
                preferred_element_type=jnp.float32) + b2.astype(jnp.float32)
    return jax.nn.silu(y).astype(x.dtype)


if __name__ == "__main__":
    key = jax.random.PRNGKey(0)
    kx, kparams = jax.random.split(key)

    # Small but representative: M = 4*100 = 400 rows (ragged tm boundary handled by
    # the cdiv grid), feature dims 32 -> 48 (weights pre-padded to 128 lanes).
    batch, seq, input_dim, output_dim = 4, 100, 32, 48
    x = jax.random.normal(kx, (batch, seq, input_dim), jnp.float32)
    w1, b1, w2, b2 = init_swish_block_params(kparams, input_dim, output_dim)
    params = prepare_swish_block_params(w1, b1, w2, b2)

    ref_mm = swish_block_ref_mm(x, w1, b1, w2, b2)     # same bf16/f32 path as kernel
    ref_f32 = swish_block_ref_f32(x, w1, b1, w2, b2)   # pure f32 reference

    # Fused resident-weight path.
    out = jax.block_until_ready(swish_block(x, params))
    assert out.shape == (batch, seq, output_dim)
    assert jnp.allclose(out, ref_mm, atol=1e-2, rtol=1e-2), "mismatch vs bf16-path ref"
    assert jnp.allclose(out, ref_f32, atol=5e-2, rtol=5e-2), "mismatch vs f32 ref"

    # Exercise the large-dim (non-resident weights) tiled fallback path too.
    out_tiled = jax.block_until_ready(swish_block(x, params, force_tiled=True))
    assert out_tiled.shape == (batch, seq, output_dim)
    assert jnp.allclose(out_tiled, ref_mm, atol=1e-2, rtol=1e-2), "tiled path mismatch"

    # bf16 output option (halves HBM writeback).
    out_bf16 = jax.block_until_ready(swish_block(x, params, out_dtype=jnp.bfloat16))
    assert out_bf16.dtype == jnp.bfloat16
    assert jnp.allclose(out_bf16.astype(jnp.float32), ref_f32, atol=5e-2, rtol=5e-2)

    print("KERNEL_OK")
</pallas_src>

<mosaic_0001>
module attributes {stable_mosaic.version = 11 : i64} {
  func.func @probe(%arg0: i32, %arg1: memref<8x128xf32, #tpu.memory_space<vmem>>, %arg2: memref<8x128xf32, #tpu.memory_space<vmem>>, %arg3: memref<8x128xf32, #tpu.memory_space<vmem>>) attributes {dimension_semantics = [#tpu.dimension_semantics<arbitrary>], iteration_bounds = array<i64: 1>, scalar_prefetch = 0 : i64, scratch_operands = 0 : i64, tpu.core_type = #tpu.core_type<tc>, window_params = [{pipeline_mode = #tpu.pipeline_mode<synchronous>, transform_indices = @transform_0, window_bounds = array<i64: 8, 128>}, {pipeline_mode = #tpu.pipeline_mode<synchronous>, transform_indices = @transform_1, window_bounds = array<i64: 8, 128>}, {pipeline_mode = #tpu.pipeline_mode<synchronous>, transform_indices = @transform_2, window_bounds = array<i64: 8, 128>}]} {
    %c0 = arith.constant 0 : index
    %c0_0 = arith.constant 0 : index
    %0 = vector.load %arg1[%c0, %c0_0] : memref<8x128xf32, #tpu.memory_space<vmem>>, vector<8x128xf32>
    %c0_1 = arith.constant 0 : index
    %c0_2 = arith.constant 0 : index
    %1 = vector.load %arg2[%c0_1, %c0_2] : memref<8x128xf32, #tpu.memory_space<vmem>>, vector<8x128xf32>
    %2 = arith.addf %0, %1 : vector<8x128xf32>
    %c0_3 = arith.constant 0 : index
    %c0_4 = arith.constant 0 : index
    %3 = vector.load %arg3[%c0_3, %c0_4] : memref<8x128xf32, #tpu.memory_space<vmem>>, vector<8x128xf32>
    tpu.vector_store %arg3[%c0_3, %c0_4], %2 {strides = array<i32>} : memref<8x128xf32, #tpu.memory_space<vmem>>, vector<8x128xf32>,
    return
  }
  func.func @transform_0(%arg0: i32) -> (i32, i32) {
    %c0_i32 = arith.constant 0 : i32
    %c0_i32_0 = arith.constant 0 : i32
    %c0_i32_1 = arith.constant 0 : i32
    return %c0_i32, %c0_i32_0 : i32, i32
  }
  func.func @transform_1(%arg0: i32) -> (i32, i32) {
    %c0_i32 = arith.constant 0 : i32
    %c0_i32_0 = arith.constant 0 : i32
    %c0_i32_1 = arith.constant 0 : i32
    return %c0_i32, %c0_i32_0 : i32, i32
  }
  func.func @transform_2(%arg0: i32) -> (i32, i32) {
    %c0_i32 = arith.constant 0 : i32
    %c0_i32_0 = arith.constant 0 : i32
    %c0_i32_1 = arith.constant 0 : i32
    return %c0_i32, %c0_i32_0 : i32, i32
  }
}

module attributes {stable_mosaic.version = 11 : i64} {
  func.func @_fused_swish_kernel(%arg0: i32, %arg1: memref<400x32xf32, #tpu.memory_space<vmem>>, %arg2: memref<32x128xbf16, #tpu.memory_space<vmem>>, %arg3: memref<1x128xf32, #tpu.memory_space<vmem>>, %arg4: memref<128x128xbf16, #tpu.memory_space<vmem>>, %arg5: memref<1x128xf32, #tpu.memory_space<vmem>>, %arg6: memref<400x128xf32, #tpu.memory_space<vmem>>) attributes {dimension_semantics = [#tpu.dimension_semantics<parallel>], iteration_bounds = array<i64: 1>, scalar_prefetch = 0 : i64, scratch_operands = 0 : i64, tpu.core_type = #tpu.core_type<tc>, window_params = [{transform_indices = @transform_0, window_bounds = array<i64: 400, 32>}, {pipeline_mode = #tpu.pipeline_mode<synchronous>, transform_indices = @transform_1, window_bounds = array<i64: 32, 128>}, {pipeline_mode = #tpu.pipeline_mode<synchronous>, transform_indices = @transform_2, window_bounds = array<i64: 1, 128>}, {pipeline_mode = #tpu.pipeline_mode<synchronous>, transform_indices = @transform_3, window_bounds = array<i64: 128, 128>}, {pipeline_mode = #tpu.pipeline_mode<synchronous>, transform_indices = @transform_4, window_bounds = array<i64: 1, 128>}, {transform_indices = @transform_5, window_bounds = array<i64: 400, 128>}]} {
    %c0 = arith.constant 0 : index
    %c0_0 = arith.constant 0 : index
    %0 = vector.load %arg1[%c0, %c0_0] : memref<400x32xf32, #tpu.memory_space<vmem>>, vector<400x32xf32>
    %1 = arith.truncf %0 : vector<400x32xf32> to vector<400x32xbf16>
    %c0_1 = arith.constant 0 : index
    %c0_2 = arith.constant 0 : index
    %2 = vector.load %arg2[%c0_1, %c0_2] : memref<32x128xbf16, #tpu.memory_space<vmem>>, vector<32x128xbf16>
    %cst = arith.constant dense<0.000000e+00> : vector<400x128xf32>
    %3 = tpu.matmul %1, %2, %cst {dimension_numbers = #tpu.dot_dimension_numbers<[1], [0], [0], [1], [0, 0, 1, 1], [], []>} : vector<400x32xbf16>, vector<32x128xbf16>, vector<400x128xf32> -> vector<400x128xf32>
    %c0_3 = arith.constant 0 : index
    %c0_4 = arith.constant 0 : index
    %4 = vector.load %arg3[%c0_3, %c0_4] : memref<1x128xf32, #tpu.memory_space<vmem>>, vector<1x128xf32>
    %5 = vector.broadcast %4 : vector<1x128xf32> to vector<400x128xf32>
    %6 = arith.addf %3, %5 : vector<400x128xf32>
    %cst_5 = arith.constant 0.000000e+00 : f32
    %7 = vector.broadcast %cst_5 : f32 to vector<400x128xf32>
    %8 = arith.subf %7, %6 : vector<400x128xf32>
    %9 = math.exp %8 : vector<400x128xf32>
    %cst_6 = arith.constant 1.000000e+00 : f32
    %10 = vector.broadcast %cst_6 : f32 to vector<400x128xf32>
    %11 = arith.addf %10, %9 : vector<400x128xf32>
    %12 = tpu.reciprocal %11 {approx = true} : vector<400x128xf32> -> vector<400x128xf32>
    %13 = arith.mulf %6, %12 : vector<400x128xf32>
    %14 = arith.truncf %13 : vector<400x128xf32> to vector<400x128xbf16>
    %c0_7 = arith.constant 0 : index
    %c0_8 = arith.constant 0 : index
    %15 = vector.load %arg4[%c0_7, %c0_8] : memref<128x128xbf16, #tpu.memory_space<vmem>>, vector<128x128xbf16>
    %cst_9 = arith.constant dense<0.000000e+00> : vector<400x128xf32>
    %16 = tpu.matmul %14, %15, %cst_9 {dimension_numbers = #tpu.dot_dimension_numbers<[1], [0], [0], [1], [0, 0, 1, 1], [], []>} : vector<400x128xbf16>, vector<128x128xbf16>, vector<400x128xf32> -> vector<400x128xf32>
    %c0_10 = arith.constant 0 : index
    %c0_11 = arith.constant 0 : index
    %17 = vector.load %arg5[%c0_10, %c0_11] : memref<1x128xf32, #tpu.memory_space<vmem>>, vector<1x128xf32>
    %18 = vector.broadcast %17 : vector<1x128xf32> to vector<400x128xf32>
    %19 = arith.addf %16, %18 : vector<400x128xf32>
    %cst_12 = arith.constant 0.000000e+00 : f32
    %20 = vector.broadcast %cst_12 : f32 to vector<400x128xf32>
    %21 = arith.subf %20, %19 : vector<400x128xf32>
    %22 = math.exp %21 : vector<400x128xf32>
    %cst_13 = arith.constant 1.000000e+00 : f32
    %23 = vector.broadcast %cst_13 : f32 to vector<400x128xf32>
    %24 = arith.addf %23, %22 : vector<400x128xf32>
    %25 = tpu.reciprocal %24 {approx = true} : vector<400x128xf32> -> vector<400x128xf32>
    %26 = arith.mulf %19, %25 : vector<400x128xf32>
    %c0_14 = arith.constant 0 : index
    %c0_15 = arith.constant 0 : index
    %27 = vector.load %arg6[%c0_14, %c0_15] : memref<400x128xf32, #tpu.memory_space<vmem>>, vector<400x128xf32>
    tpu.vector_store %arg6[%c0_14, %c0_15], %26 {strides = array<i32>} : memref<400x128xf32, #tpu.memory_space<vmem>>, vector<400x128xf32>,
    return
  }
  func.func @transform_0(%arg0: i32) -> (i32, i32) {
    %c0_i32 = arith.constant 0 : i32
    %c0_i32_0 = arith.constant 0 : i32
    return %arg0, %c0_i32 : i32, i32
  }
  func.func @transform_1(%arg0: i32) -> (i32, i32) {
    %c0_i32 = arith.constant 0 : i32
    %c0_i32_0 = arith.constant 0 : i32
    %c0_i32_1 = arith.constant 0 : i32
    return %c0_i32, %c0_i32_0 : i32, i32
  }
  func.func @transform_2(%arg0: i32) -> (i32, i32) {
    %c0_i32 = arith.constant 0 : i32
    %c0_i32_0 = arith.constant 0 : i32
    %c0_i32_1 = arith.constant 0 : i32
    return %c0_i32, %c0_i32_0 : i32, i32
  }
  func.func @transform_3(%arg0: i32) -> (i32, i32) {
    %c0_i32 = arith.constant 0 : i32
    %c0_i32_0 = arith.constant 0 : i32
    %c0_i32_1 = arith.constant 0 : i32
    return %c0_i32, %c0_i32_0 : i32, i32
  }
  func.func @transform_4(%arg0: i32) -> (i32, i32) {
    %c0_i32 = arith.constant 0 : i32
    %c0_i32_0 = arith.constant 0 : i32
    %c0_i32_1 = arith.constant 0 : i32
    return %c0_i32, %c0_i32_0 : i32, i32
  }
  func.func @transform_5(%arg0: i32) -> (i32, i32) {
    %c0_i32 = arith.constant 0 : i32
    %c0_i32_0 = arith.constant 0 : i32
    return %arg0, %c0_i32 : i32, i32
  }
}

</mosaic_0001>

<llo_original>
// kernel: tpu_custom_call.1
$region0: #{tpu_custom_call.1}
  #allocation0 [shape = 'u32[]', space=smem, size = 0x4, offset = 0x4, fixed_abs, tag = 'smem constant byte address 0x4 - core index']
  #allocation1 [shape = 'u32[144,128]{1,0:T(1,128)}', space=vmem, size = 0x12000, scoped, tag = 'internal scratch']
  %s0 = inlined_call_operand.hbm [shape: f32[8,128], index: 0, kind: input, shape index: {}]
  %s1 = inlined_call_operand.hbm [shape: f32[8,128], index: 1, kind: input, shape index: {}]
  %s2 = inlined_call_operand.hbm [shape: f32[8,128], index: 2, kind: output, shape index: {}]
  %s3 = sld [smem:[#allocation0]]
  $region26: #{tpu_custom_call.1} parent=0
    _
  %s5 = ssub.s32 1, %s3
  %s6 = scalar_select 0, %s5, %s3
  $region1: #{tpu_custom_call.1} parent=0
    #allocation2 [shape = 'u8[4096]{0}', space=vmem, size = 0x1000, scoped, tag = 'input window, operand 0, single buffered']
    #allocation3 [shape = 's32[1]{0}', space=sflag, size = 0x4, scoped, tag = 'scoped memory for tpu_custom_call.1']
    #allocation4 [shape = 's32[1]{0}', space=sflag, size = 0x4, scoped, tag = 'scoped memory for tpu_custom_call.1']
    #allocation5 [shape = 'u8[4096]{0}', space=vmem, size = 0x1000, scoped, tag = 'input window, operand 1, single buffered']
    #allocation6 [shape = 's32[1]{0}', space=sflag, size = 0x4, scoped, tag = 'scoped memory for tpu_custom_call.1']
    #allocation7 [shape = 'u8[4096]{0}', space=vmem, size = 0x1000, scoped, tag = 'output window, operand 0, single buffered']
    %7 = vsyncpa [#allocation3], 0
    %8 = vsyncpa [#allocation6], 0
    %9 = vsyncpa [#allocation4], 0
    // Predicated region
    $region2: #{tpu_custom_call.1} parent=1 // pred_check
      _
    $region3: #{tpu_custom_call.1} parent=1 // pred_check_branch
      %11 = sbr.rel (0) target = $region5
    $region4: #{tpu_custom_call.1} parent=1 // pred_region
      %s13 = ssub.s32 128, 128
      %14 = vsyncadd [#allocation3], %s13
      %s16 = sshll.u32 [#allocation2], 4
      %s17 = int_to_ptr.vmem [resolvable:$true] %s16
      %19 = dma.hbm_to_vmem [thread:$0]  %s0, 128, %s17, [#allocation3]
    $region5: #{tpu_custom_call.1} parent=1 // pred_fallthru
      _
    // Predicated region
    $region6: #{tpu_custom_call.1} parent=1 // pred_check
      _
    $region7: #{tpu_custom_call.1} parent=1 // pred_check_branch
      %21 = sbr.rel (0) target = $region9
    $region8: #{tpu_custom_call.1} parent=1 // pred_region
      %s23 = ssub.s32 128, 128
      %24 = vsyncadd [#allocation6], %s23
      %s26 = sshll.u32 [#allocation5], 4
      %s27 = int_to_ptr.vmem [resolvable:$true] %s26
      %29 = dma.hbm_to_vmem [thread:$0]  %s1, 128, %s27, [#allocation6]
    $region9: #{tpu_custom_call.1} parent=1 // pred_fallthru
      _
    // Predicated region
    $region10: #{tpu_custom_call.1} parent=1 // pred_check
      _
    $region11: #{tpu_custom_call.1} parent=1 // pred_check_branch
      %31 = sbr.rel (0) target = $region13
    $region12: #{tpu_custom_call.1} parent=1 // pred_region
      %32 = dma.done [#allocation3], 128
    $region13: #{tpu_custom_call.1} parent=1 // pred_fallthru
      _
    // Predicated region
    $region14: #{tpu_custom_call.1} parent=1 // pred_check
      _
    $region15: #{tpu_custom_call.1} parent=1 // pred_check_branch
      %34 = sbr.rel (0) target = $region17
    $region16: #{tpu_custom_call.1} parent=1 // pred_region
      %35 = dma.done [#allocation6], 128
    $region17: #{tpu_custom_call.1} parent=1 // pred_fallthru
      _
    %v36 = vld [vmem:[#allocation2] sm:$0xff]
    %v37 = vld [vmem:[#allocation5] sm:$0xff]
    %v38 = vadd.f32 %v36, %v37
    %39 = vst [vmem:[#allocation7] sm:$0xff] %v38
    // Predicated region
    $region18: #{tpu_custom_call.1} parent=1 // pred_check
      _
    $region19: #{tpu_custom_call.1} parent=1 // pred_check_branch
      %41 = sbr.rel (0) target = $region21
    $region20: #{tpu_custom_call.1} parent=1 // pred_region
      %s43 = ssub.s32 128, 128
      %44 = vsyncadd [#allocation4], %s43
      %s46 = sshll.u32 [#allocation7], 4
      %s47 = int_to_ptr.vmem [resolvable:$true] %s46
      %49 = dma.vmem_to_hbm [thread:$0]  %s47, 128, %s2, [#allocation4]
    $region21: #{tpu_custom_call.1} parent=1 // pred_fallthru
      _
    // Predicated region
    $region22: #{tpu_custom_call.1} parent=1 // pred_check
      _
    $region23: #{tpu_custom_call.1} parent=1 // pred_check_branch
      %51 = sbr.rel (0) target = $region25
    $region24: #{tpu_custom_call.1} parent=1 // pred_region
      %52 = dma.done [#allocation4], 128
    $region25: #{tpu_custom_call.1} parent=1 // pred_fallthru
      _
    %53 = vsyncpa [#allocation3], 1
    %54 = vsyncpa [#allocation6], 1
    %55 = vsyncpa [#allocation4], 1

// kernel: _fused_forward.1
$region0: #{_fused_forward.1}
  #allocation0 [shape = 'u32[]', space=smem, size = 0x4, offset = 0x4, fixed_abs, tag = 'smem constant byte address 0x4 - core index']
  #allocation1 [shape = 'u32[144,128]{1,0:T(1,128)}', space=vmem, size = 0x12000, scoped, tag = 'internal scratch']
  %s0 = inlined_call_operand.vmem [shape: f32[400,32], index: 0, kind: input, shape index: {}]
  %s1 = inlined_call_operand.vmem [shape: bf16[32,128], index: 1, kind: input, shape index: {}]
  %s2 = inlined_call_operand.vmem [shape: f32[1,128], index: 2, kind: input, shape index: {}]
  %s3 = inlined_call_operand.vmem [shape: bf16[128,128], index: 3, kind: input, shape index: {}]
  %s4 = inlined_call_operand.vmem [shape: f32[1,128], index: 4, kind: input, shape index: {}]
  %s5 = inlined_call_operand.hbm [shape: f32[400,128], index: 5, kind: output, shape index: {}]
  %s6 = sld [smem:[#allocation0]]
  $region30: #{_fused_forward.1} parent=0
    _
  %s8 = ssub.s32 1, %s6
  %s9 = scalar_select 0, %s8, %s6
  $region1: #{_fused_forward.1} parent=0
    #allocation2 [shape = 'u8[204800]{0}', space=vmem, size = 0x32000, scoped, tag = 'output window, operand 0, single buffered']
    #allocation3 [shape = 's32[1]{0}', space=sflag, size = 0x4, scoped, tag = 'scoped memory for _fused_forward.1']
    %10 = vsyncpa [#allocation3], 0
    // Predicated region
    $region2: #{_fused_forward.1} parent=1 // pred_check
      _
    $region3: #{_fused_forward.1} parent=1 // pred_check_branch
      %12 = sbr.rel (0) target = $region5
    $region4: #{_fused_forward.1} parent=1 // pred_region
      _
    $region5: #{_fused_forward.1} parent=1 // pred_fallthru
      _
    // Predicated region
    $region6: #{_fused_forward.1} parent=1 // pred_check
      _
    $region7: #{_fused_forward.1} parent=1 // pred_check_branch
      %14 = sbr.rel (0) target = $region9
    $region8: #{_fused_forward.1} parent=1 // pred_region
      _
    $region9: #{_fused_forward.1} parent=1 // pred_fallthru
      _
    // Predicated region
    $region10: #{_fused_forward.1} parent=1 // pred_check
      _
    $region11: #{_fused_forward.1} parent=1 // pred_check_branch
      %16 = sbr.rel (0) target = $region13
    $region12: #{_fused_forward.1} parent=1 // pred_region
      _
    $region13: #{_fused_forward.1} parent=1 // pred_fallthru
      _
    // Predicated region
    $region14: #{_fused_forward.1} parent=1 // pred_check
      _
    $region15: #{_fused_forward.1} parent=1 // pred_check_branch
      %18 = sbr.rel (0) target = $region17
    $region16: #{_fused_forward.1} parent=1 // pred_region
      _
    $region17: #{_fused_forward.1} parent=1 // pred_fallthru
      _
    // Predicated region
    $region18: #{_fused_forward.1} parent=1 // pred_check
      _
    $region19: #{_fused_forward.1} parent=1 // pred_check_branch
      %20 = sbr.rel (0) target = $region21
    $region20: #{_fused_forward.1} parent=1 // pred_region
      _
    $region21: #{_fused_forward.1} parent=1 // pred_fallthru
      _
    %v22 = vld [vmem:[%s0] sm:$0xff]
    %v23 = vld [vmem:[%s0 + $0x8] sm:$0xff]
    %v24 = vld [vmem:[%s0 + $0x10] sm:$0xff]
    %v25 = vld [vmem:[%s0 + $0x18] sm:$0xff]
    %v26 = vld [vmem:[%s0 + $0x20] sm:$0xff]
    %v27 = vld [vmem:[%s0 + $0x28] sm:$0xff]
    %v28 = vld [vmem:[%s0 + $0x30] sm:$0xff]
    %v29 = vld [vmem:[%s0 + $0x38] sm:$0xff]
    %v30 = vld [vmem:[%s0 + $0x40] sm:$0xff]
    %v31 = vld [vmem:[%s0 + $0x48] sm:$0xff]
    %v32 = vld [vmem:[%s0 + $0x50] sm:$0xff]
    %v33 = vld [vmem:[%s0 + $0x58] sm:$0xff]
    %v34 = vld [vmem:[%s0 + $0x60] sm:$0xff]
    %v35 = vld [vmem:[%s0 + $0x68] sm:$0xff]
    %v36 = vld [vmem:[%s0 + $0x70] sm:$0xff]
    %v37 = vld [vmem:[%s0 + $0x78] sm:$0xff]
    %v38 = vld [vmem:[%s0 + $0x80] sm:$0xff]
    %v39 = vld [vmem:[%s0 + $0x88] sm:$0xff]
    %v40 = vld [vmem:[%s0 + $0x90] sm:$0xff]
    %v41 = vld [vmem:[%s0 + $0x98] sm:$0xff]
    %v42 = vld [vmem:[%s0 + $0xa0] sm:$0xff]
    %v43 = vld [vmem:[%s0 + $0xa8] sm:$0xff]
    %v44 = vld [vmem:[%s0 + $0xb0] sm:$0xff]
    %v45 = vld [vmem:[%s0 + $0xb8] sm:$0xff]
    %v46 = vld [vmem:[%s0 + $0xc0] sm:$0xff]
    %v47 = vld [vmem:[%s0 + $0xc8] sm:$0xff]
    %v48 = vld [vmem:[%s0 + $0xd0] sm:$0xff]
    %v49 = vld [vmem:[%s0 + $0xd8] sm:$0xff]
    %v50 = vld [vmem:[%s0 + $0xe0] sm:$0xff]
    %v51 = vld [vmem:[%s0 + $0xe8] sm:$0xff]
    %v52 = vld [vmem:[%s0 + $0xf0] sm:$0xff]
    %v53 = vld [vmem:[%s0 + $0xf8] sm:$0xff]
    %v54 = vld [vmem:[%s0 + $0x100] sm:$0xff]
    %v55 = vld [vmem:[%s0 + $0x108] sm:$0xff]
    %v56 = vld [vmem:[%s0 + $0x110] sm:$0xff]
    %v57 = vld [vmem:[%s0 + $0x118] sm:$0xff]
    %v58 = vld [vmem:[%s0 + $0x120] sm:$0xff]
    %v59 = vld [vmem:[%s0 + $0x128] sm:$0xff]
    %v60 = vld [vmem:[%s0 + $0x130] sm:$0xff]
    %v61 = vld [vmem:[%s0 + $0x138] sm:$0xff]
    %v62 = vld [vmem:[%s0 + $0x140] sm:$0xff]
    %v63 = vld [vmem:[%s0 + $0x148] sm:$0xff]
    %v64 = vld [vmem:[%s0 + $0x150] sm:$0xff]
    %v65 = vld [vmem:[%s0 + $0x158] sm:$0xff]
    %v66 = vld [vmem:[%s0 + $0x160] sm:$0xff]
    %v67 = vld [vmem:[%s0 + $0x168] sm:$0xff]
    %v68 = vld [vmem:[%s0 + $0x170] sm:$0xff]
    %v69 = vld [vmem:[%s0 + $0x178] sm:$0xff]
    %v70 = vld [vmem:[%s0 + $0x180] sm:$0xff]
    %v71 = vld [vmem:[%s0 + $0x188] sm:$0xff]
    %v72 = vpack.c.bf16 %v23, %v22
    %v73 = vpack.c.bf16 %v25, %v24
    %v74 = vpack.c.bf16 %v27, %v26
    %v75 = vpack.c.bf16 %v29, %v28
    %v76 = vpack.c.bf16 %v31, %v30
    %v77 = vpack.c.bf16 %v33, %v32
    %v78 = vpack.c.bf16 %v35, %v34
    %v79 = vpack.c.bf16 %v37, %v36
    %v80 = vpack.c.bf16 %v39, %v38
    %v81 = vpack.c.bf16 %v41, %v40
    %v82 = vpack.c.bf16 %v43, %v42
    %v83 = vpack.c.bf16 %v45, %v44
    %v84 = vpack.c.bf16 %v47, %v46
    %v85 = vpack.c.bf16 %v49, %v48
    %v86 = vpack.c.bf16 %v51, %v50
    %v87 = vpack.c.bf16 %v53, %v52
    %v88 = vpack.c.bf16 %v55, %v54
    %v89 = vpack.c.bf16 %v57, %v56
    %v90 = vpack.c.bf16 %v59, %v58
    %v91 = vpack.c.bf16 %v61, %v60
    %v92 = vpack.c.bf16 %v63, %v62
    %v93 = vpack.c.bf16 %v65, %v64
    %v94 = vpack.c.bf16 %v67, %v66
    %v95 = vpack.c.bf16 %v69, %v68
    %v96 = vpack.c.bf16 %v71, %v70
    %v97 = vld [vmem:[%s1] sm:$0xf]
    %v98 = vld [vmem:[%s1 + $0x4] sm:$0xf]
    %v99 = vld [vmem:[%s1 + $0x8] sm:$0xf]
    %v100 = vld [vmem:[%s1 + $0xc] sm:$0xf]
    %v101 = vld [vmem:[%s2] sm:$0x1]
    %v103 = vlaneseq
    %v104 = vshrl.u32 %v103, 7
    %v105 = vsub.s32 0, %v104
    %v106 = vrot.slane %v101, %v105
    %v112 = vunpack.c.l.b16 %v97
    %v113 = vunpack.c.l.b16 %v98
    %v114 = vunpack.c.l.b16 %v99
    %v115 = vunpack.c.l.b16 %v100
    %v116 = vpack.c.b16 %v113, %v112
    %v117 = vpack.c.b16 %v115, %v114
    %vm120 = vcmask 261120
    %v122 = vsel %vm120, %v72, 0
    %v125 = vsel %vm120, %v73, 0
    %v128 = vsel %vm120, %v74, 0
    %v131 = vsel %vm120, %v75, 0
    %v134 = vsel %vm120, %v76, 0
    %v137 = vsel %vm120, %v77, 0
    %v140 = vsel %vm120, %v78, 0
    %v143 = vsel %vm120, %v79, 0
    %v146 = vsel %vm120, %v80, 0
    %v149 = vsel %vm120, %v81, 0
    %v152 = vsel %vm120, %v82, 0
    %v155 = vsel %vm120, %v83, 0
    %v158 = vsel %vm120, %v84, 0
    %v161 = vsel %vm120, %v85, 0
    %v164 = vsel %vm120, %v86, 0
    %v167 = vsel %vm120, %v87, 0
    %v170 = vsel %vm120, %v88, 0
    %v173 = vsel %vm120, %v89, 0
    %v176 = vsel %vm120, %v90, 0
    %v179 = vsel %vm120, %v91, 0
    %v182 = vsel %vm120, %v92, 0
    %v185 = vsel %vm120, %v93, 0
    %v188 = vsel %vm120, %v94, 0
    %v191 = vsel %vm120, %v95, 0
    %v194 = vsel %vm120, %v96, 0
    %196 = vmatprep.subr.bf16.mxu0 0
    %197 = vmatpush1.bf16.msra.mxu0 %v116
    %198 = vmatprep.subr.bf16.mxu0 0
    %199 = vmatpush1.bf16.msra.mxu0 %v117
    %200 = vmatprep.subr.bf16.mxu0 0
    %201 = vmatpush1.bf16.msra.mxu0 0
    %202 = vmatprep.subr.bf16.mxu0 0
    %203 = vmatpush1.bf16.msra.mxu0 0
    %204 = vmatprep.subr.bf16.mxu0 0
    %205 = vmatpush1.bf16.msra.mxu0 0
    %206 = vmatprep.subr.bf16.mxu0 0
    %207 = vmatpush1.bf16.msra.mxu0 0
    %208 = vmatprep.subr.bf16.mxu0 0
    %209 = vmatpush1.bf16.msra.mxu0 0
    %210 = vmatprep.subr.bf16.mxu0 0
    %211 = vmatpush1.bf16.msra.mxu0 0
    %212 = vmatprep.subr.bf16.mxu0 0
    %213 = vmatpush1.bf16.msra.mxu0 0
    %214 = vmatprep.subr.bf16.mxu0 0
    %215 = vmatpush1.bf16.msra.mxu0 0
    %216 = vmatprep.subr.bf16.mxu0 0
    %217 = vmatpush1.bf16.msra.mxu0 0
    %218 = vmatprep.subr.bf16.mxu0 0
    %219 = vmatpush1.bf16.msra.mxu0 0
    %220 = vmatprep.subr.bf16.mxu0 0
    %221 = vmatpush1.bf16.msra.mxu0 0
    %222 = vmatprep.subr.bf16.mxu0 0
    %223 = vmatpush1.bf16.msra.mxu0 0
    %224 = vmatprep.subr.bf16.mxu0 0
    %225 = vmatpush1.bf16.msra.mxu0 0
    %226 = vmatprep.subr.bf16.mxu0 0
    %227 = vmatpush1.bf16.msra.mxu0 0
    %228 = vmatprep.mubr.bf16.mxu0 0
    %229 = vmatmul.mubr.bf16.gmra.mrb[0].mxu0 %v122
    %v230 = vpop.f32.mrb[0].mxu0
    %v231 = vadd.f32 %v106, %v230
    %v232 = vpop.f32.mrb[0].mxu0
    %v233 = vpop.f32.mrb[0].mxu0
    %v234 = vadd.f32 %v106, %v233
    %v235 = vpop.f32.mrb[0].mxu0
    %236 = vmatprep.mubr.bf16.mxu0 0
    %237 = vmatmul.mubr.bf16.gmra.mrb[0].mxu0 %v125
    %v238 = vpop.f32.mrb[0].mxu0
    %v239 = vadd.f32 %v106, %v238
    %v240 = vpop.f32.mrb[0].mxu0
    %v241 = vpop.f32.mrb[0].mxu0
    %v242 = vadd.f32 %v106, %v241
    %v243 = vpop.f32.mrb[0].mxu0
    %244 = vmatprep.mubr.bf16.mxu0 0
    %245 = vmatmul.mubr.bf16.gmra.mrb[0].mxu0 %v128
    %v246 = vpop.f32.mrb[0].mxu0
    %v247 = vadd.f32 %v106, %v246
    %v248 = vpop.f32.mrb[0].mxu0
    %v249 = vpop.f32.mrb[0].mxu0
    %v250 = vadd.f32 %v106, %v249
    %v251 = vpop.f32.mrb[0].mxu0
    %252 = vmatprep.mubr.bf16.mxu0 0
    %253 = vmatmul.mubr.bf16.gmra.mrb[0].mxu0 %v131
    %v254 = vpop.f32.mrb[0].mxu0
    %v255 = vadd.f32 %v106, %v254
    %v256 = vpop.f32.mrb[0].mxu0
    %v257 = vpop.f32.mrb[0].mxu0
    %v258 = vadd.f32 %v106, %v257
    %v259 = vpop.f32.mrb[0].mxu0
    %260 = vmatprep.mubr.bf16.mxu0 0
    %261 = vmatmul.mubr.bf16.gmra.mrb[0].mxu0 %v134
    %v262 = vpop.f32.mrb[0].mxu0
    %v263 = vadd.f32 %v106, %v262
    %v264 = vpop.f32.mrb[0].mxu0
    %v265 = vpop.f32.mrb[0].mxu0
    %v266 = vadd.f32 %v106, %v265
    %v267 = vpop.f32.mrb[0].mxu0
    %268 = vmatprep.mubr.bf16.mxu0 0
    %269 = vmatmul.mubr.bf16.gmra.mrb[0].mxu0 %v137
    %v270 = vpop.f32.mrb[0].mxu0
    %v271 = vadd.f32 %v106, %v270
    %v272 = vpop.f32.mrb[0].mxu0
    %v273 = vpop.f32.mrb[0].mxu0
    %v274 = vadd.f32 %v106, %v273
    %v275 = vpop.f32.mrb[0].mxu0
    %276 = vmatprep.mubr.bf16.mxu0 0
    %277 = vmatmul.mubr.bf16.gmra.mrb[0].mxu0 %v140
    %v278 = vpop.f32.mrb[0].mxu0
    %v279 = vadd.f32 %v106, %v278
    %v280 = vpop.f32.mrb[0].mxu0
    %v281 = vpop.f32.mrb[0].mxu0
    %v282 = vadd.f32 %v106, %v281
    %v283 = vpop.f32.mrb[0].mxu0
    %284 = vmatprep.mubr.bf16.mxu0 0
    %285 = vmatmul.mubr.bf16.gmra.mrb[0].mxu0 %v143
    %v286 = vpop.f32.mrb[0].mxu0
    %v287 = vadd.f32 %v106, %v286
    %v288 = vpop.f32.mrb[0].mxu0
    %v289 = vpop.f32.mrb[0].mxu0
    %v290 = vadd.f32 %v106, %v289
    %v291 = vpop.f32.mrb[0].mxu0
    %292 = vmatprep.mubr.bf16.mxu0 0
    %293 = vmatmul.mubr.bf16.gmra.mrb[0].mxu0 %v146
    %v294 = vpop.f32.mrb[0].mxu0
    %v295 = vadd.f32 %v106, %v294
    %v296 = vpop.f32.mrb[0].mxu0
    %v297 = vpop.f32.mrb[0].mxu0
    %v298 = vadd.f32 %v106, %v297
    %v299 = vpop.f32.mrb[0].mxu0
    %300 = vmatprep.mubr.bf16.mxu0 0
    %301 = vmatmul.mubr.bf16.gmra.mrb[0].mxu0 %v149
    %v302 = vpop.f32.mrb[0].mxu0
    %v303 = vadd.f32 %v106, %v302
    %v304 = vpop.f32.mrb[0].mxu0
    %v305 = vpop.f32.mrb[0].mxu0
    %v306 = vadd.f32 %v106, %v305
    %v307 = vpop.f32.mrb[0].mxu0
    %308 = vmatprep.mubr.bf16.mxu0 0
    %309 = vmatmul.mubr.bf16.gmra.mrb[0].mxu0 %v152
    %v310 = vpop.f32.mrb[0].mxu0
    %v311 = vadd.f32 %v106, %v310
    %v312 = vpop.f32.mrb[0].mxu0
    %v313 = vpop.f32.mrb[0].mxu0
    %v314 = vadd.f32 %v106, %v313
    %v315 = vpop.f32.mrb[0].mxu0
    %316 = vmatprep.mubr.bf16.mxu0 0
    %317 = vmatmul.mubr.bf16.gmra.mrb[0].mxu0 %v155
    %v318 = vpop.f32.mrb[0].mxu0
    %v319 = vadd.f32 %v106, %v318
    %v320 = vpop.f32.mrb[0].mxu0
    %v321 = vpop.f32.mrb[0].mxu0
    %v322 = vadd.f32 %v106, %v321
    %v323 = vpop.f32.mrb[0].mxu0
    %324 = vmatprep.mubr.bf16.mxu0 0
    %325 = vmatmul.mubr.bf16.gmra.mrb[0].mxu0 %v158
    %v326 = vpop.f32.mrb[0].mxu0
    %v327 = vadd.f32 %v106, %v326
    %v328 = vpop.f32.mrb[0].mxu0
    %v329 = vpop.f32.mrb[0].mxu0
    %v330 = vadd.f32 %v106, %v329
    %v331 = vpop.f32.mrb[0].mxu0
    %332 = vmatprep.mubr.bf16.mxu0 0
    %333 = vmatmul.mubr.bf16.gmra.mrb[0].mxu0 %v161
    %v334 = vpop.f32.mrb[0].mxu0
    %v335 = vadd.f32 %v106, %v334
    %v336 = vpop.f32.mrb[0].mxu0
    %v337 = vpop.f32.mrb[0].mxu0
    %v338 = vadd.f32 %v106, %v337
    %v339 = vpop.f32.mrb[0].mxu0
    %340 = vmatprep.mubr.bf16.mxu0 0
    %341 = vmatmul.mubr.bf16.gmra.mrb[0].mxu0 %v164
    %v342 = vpop.f32.mrb[0].mxu0
    %v343 = vadd.f32 %v106, %v342
    %v344 = vpop.f32.mrb[0].mxu0
    %v345 = vpop.f32.mrb[0].mxu0
    %v346 = vadd.f32 %v106, %v345
    %v347 = vpop.f32.mrb[0].mxu0
    %348 = vmatprep.mubr.bf16.mxu0 0
    %349 = vmatmul.mubr.bf16.gmra.mrb[0].mxu0 %v167
    %v350 = vpop.f32.mrb[0].mxu0
    %v351 = vadd.f32 %v106, %v350
    %v352 = vpop.f32.mrb[0].mxu0
    %v353 = vpop.f32.mrb[0].mxu0
    %v354 = vadd.f32 %v106, %v353
    %v355 = vpop.f32.mrb[0].mxu0
    %356 = vmatprep.mubr.bf16.mxu0 0
    %357 = vmatmul.mubr.bf16.gmra.mrb[0].mxu0 %v170
    %v358 = vpop.f32.mrb[0].mxu0
    %v359 = vadd.f32 %v106, %v358
    %v360 = vpop.f32.mrb[0].mxu0
    %v361 = vpop.f32.mrb[0].mxu0
    %v362 = vadd.f32 %v106, %v361
    %v363 = vpop.f32.mrb[0].mxu0
    %364 = vmatprep.mubr.bf16.mxu0 0
    %365 = vmatmul.mubr.bf16.gmra.mrb[0].mxu0 %v173
    %v366 = vpop.f32.mrb[0].mxu0
    %v367 = vadd.f32 %v106, %v366
    %v368 = vpop.f32.mrb[0].mxu0
    %v369 = vpop.f32.mrb[0].mxu0
    %v370 = vadd.f32 %v106, %v369
    %v371 = vpop.f32.mrb[0].mxu0
    %372 = vmatprep.mubr.bf16.mxu0 0
    %373 = vmatmul.mubr.bf16.gmra.mrb[0].mxu0 %v176
    %v374 = vpop.f32.mrb[0].mxu0
    %v375 = vadd.f32 %v106, %v374
    %v376 = vpop.f32.mrb[0].mxu0
    %v377 = vpop.f32.mrb[0].mxu0
    %v378 = vadd.f32 %v106, %v377
    %v379 = vpop.f32.mrb[0].mxu0
    %380 = vmatprep.mubr.bf16.mxu0 0
    %381 = vmatmul.mubr.bf16.gmra.mrb[0].mxu0 %v179
    %v382 = vpop.f32.mrb[0].mxu0
    %v383 = vadd.f32 %v106, %v382
    %v384 = vpop.f32.mrb[0].mxu0
    %v385 = vpop.f32.mrb[0].mxu0
    %v386 = vadd.f32 %v106, %v385
    %v387 = vpop.f32.mrb[0].mxu0
    %388 = vmatprep.mubr.bf16.mxu0 0
    %389 = vmatmul.mubr.bf16.gmra.mrb[0].mxu0 %v182
    %v390 = vpop.f32.mrb[0].mxu0
    %v391 = vadd.f32 %v106, %v390
    %v392 = vpop.f32.mrb[0].mxu0
    %v393 = vpop.f32.mrb[0].mxu0
    %v394 = vadd.f32 %v106, %v393
    %v395 = vpop.f32.mrb[0].mxu0
    %396 = vmatprep.mubr.bf16.mxu0 0
    %397 = vmatmul.mubr.bf16.gmra.mrb[0].mxu0 %v185
    %v398 = vpop.f32.mrb[0].mxu0
    %v399 = vadd.f32 %v106, %v398
    %v400 = vpop.f32.mrb[0].mxu0
    %v401 = vpop.f32.mrb[0].mxu0
    %v402 = vadd.f32 %v106, %v401
    %v403 = vpop.f32.mrb[0].mxu0
    %404 = vmatprep.mubr.bf16.mxu0 0
    %405 = vmatmul.mubr.bf16.gmra.mrb[0].mxu0 %v188
    %v406 = vpop.f32.mrb[0].mxu0
    %v407 = vadd.f32 %v106, %v406
    %v408 = vpop.f32.mrb[0].mxu0
    %v409 = vpop.f32.mrb[0].mxu0
    %v410 = vadd.f32 %v106, %v409
    %v411 = vpop.f32.mrb[0].mxu0
    %412 = vmatprep.mubr.bf16.mxu0 0
    %413 = vmatmul.mubr.bf16.gmra.mrb[0].mxu0 %v191
    %v414 = vpop.f32.mrb[0].mxu0
    %v415 = vadd.f32 %v106, %v414
    %v416 = vpop.f32.mrb[0].mxu0
    %v417 = vpop.f32.mrb[0].mxu0
    %v418 = vadd.f32 %v106, %v417
    %v419 = vpop.f32.mrb[0].mxu0
    %420 = vmatprep.mubr.bf16.mxu0 0
    %421 = vmatmul.mubr.bf16.gmra.mrb[0].mxu0 %v194
    %v422 = vpop.f32.mrb[0].mxu0
    %v423 = vadd.f32 %v106, %v422
    %v424 = vpop.f32.mrb[0].mxu0
    %v425 = vpop.f32.mrb[0].mxu0
    %v426 = vadd.f32 %v106, %v425
    %v427 = vpop.f32.mrb[0].mxu0
    %428 = vdwg.mxu0
    %v429 = vsub.f32 0.0, %v231
    %v430 = vsub.f32 0.0, %v234
    %v431 = vsub.f32 0.0, %v239
    %v432 = vsub.f32 0.0, %v242
    %v433 = vsub.f32 0.0, %v247
    %v434 = vsub.f32 0.0, %v250
    %v435 = vsub.f32 0.0, %v255
    %v436 = vsub.f32 0.0, %v258
    %v437 = vsub.f32 0.0, %v263
    %v438 = vsub.f32 0.0, %v266
    %v439 = vsub.f32 0.0, %v271
    %v440 = vsub.f32 0.0, %v274
    %v441 = vsub.f32 0.0, %v279
    %v442 = vsub.f32 0.0, %v282
    %v443 = vsub.f32 0.0, %v287
    %v444 = vsub.f32 0.0, %v290
    %v445 = vsub.f32 0.0, %v295
    %v446 = vsub.f32 0.0, %v298
    %v447 = vsub.f32 0.0, %v303
    %v448 = vsub.f32 0.0, %v306
    %v449 = vsub.f32 0.0, %v311
    %v450 = vsub.f32 0.0, %v314
    %v451 = vsub.f32 0.0, %v319
    %v452 = vsub.f32 0.0, %v322
    %v453 = vsub.f32 0.0, %v327
    %v454 = vsub.f32 0.0, %v330
    %v455 = vsub.f32 0.0, %v335
    %v456 = vsub.f32 0.0, %v338
    %v457 = vsub.f32 0.0, %v343
    %v458 = vsub.f32 0.0, %v346
    %v459 = vsub.f32 0.0, %v351
    %v460 = vsub.f32 0.0, %v354
    %v461 = vsub.f32 0.0, %v359
    %v462 = vsub.f32 0.0, %v362
    %v463 = vsub.f32 0.0, %v367
    %v464 = vsub.f32 0.0, %v370
    %v465 = vsub.f32 0.0, %v375
    %v466 = vsub.f32 0.0, %v378
    %v467 = vsub.f32 0.0, %v383
    %v468 = vsub.f32 0.0, %v386
    %v469 = vsub.f32 0.0, %v391
    %v470 = vsub.f32 0.0, %v394
    %v471 = vsub.f32 0.0, %v399
    %v472 = vsub.f32 0.0, %v402
    %v473 = vsub.f32 0.0, %v407
    %v474 = vsub.f32 0.0, %v410
    %v475 = vsub.f32 0.0, %v415
    %v476 = vsub.f32 0.0, %v418
    %v477 = vsub.f32 0.0, %v423
    %v478 = vsub.f32 0.0, %v426
    %v479 = vmul.f32 %v429, 1.442695
    %v480 = vpow.pop %v479
    %v481 = vmul.f32 %v430, 1.442695
    %v482 = vpow.pop %v481
    %v483 = vmul.f32 %v431, 1.442695
    %v484 = vpow.pop %v483
    %v485 = vmul.f32 %v432, 1.442695
    %v486 = vpow.pop %v485
    %v487 = vmul.f32 %v433, 1.442695
    %v488 = vpow.pop %v487
    %v489 = vmul.f32 %v434, 1.442695
    %v490 = vpow.pop %v489
    %v491 = vmul.f32 %v435, 1.442695
    %v492 = vpow.pop %v491
    %v493 = vmul.f32 %v436, 1.442695
    %v494 = vpow.pop %v493
    %v495 = vmul.f32 %v437, 1.442695
    %v496 = vpow.pop %v495
    %v497 = vmul.f32 %v438, 1.442695
    %v498 = vpow.pop %v497
    %v499 = vmul.f32 %v439, 1.442695
    %v500 = vpow.pop %v499
    %v501 = vmul.f32 %v440, 1.442695
    %v502 = vpow.pop %v501
    %v503 = vmul.f32 %v441, 1.442695
    %v504 = vpow.pop %v503
    %v505 = vmul.f32 %v442, 1.442695
    %v506 = vpow.pop %v505
    %v507 = vmul.f32 %v443, 1.442695
    %v508 = vpow.pop %v507
    %v509 = vmul.f32 %v444, 1.442695
    %v510 = vpow.pop %v509
    %v511 = vmul.f32 %v445, 1.442695
    %v512 = vpow.pop %v511
    %v513 = vmul.f32 %v446, 1.442695
    %v514 = vpow.pop %v513
    %v515 = vmul.f32 %v447, 1.442695
    %v516 = vpow.pop %v515
    %v517 = vmul.f32 %v448, 1.442695
    %v518 = vpow.pop %v517
    %v519 = vmul.f32 %v449, 1.442695
    %v520 = vpow.pop %v519
    %v521 = vmul.f32 %v450, 1.442695
    %v522 = vpow.pop %v521
    %v523 = vmul.f32 %v451, 1.442695
    %v524 = vpow.pop %v523
    %v525 = vmul.f32 %v452, 1.442695
    %v526 = vpow.pop %v525
    %v527 = vmul.f32 %v453, 1.442695
    %v528 = vpow.pop %v527
    %v529 = vmul.f32 %v454, 1.442695
    %v530 = vpow.pop %v529
    %v531 = vmul.f32 %v455, 1.442695
    %v532 = vpow.pop %v531
    %v533 = vmul.f32 %v456, 1.442695
    %v534 = vpow.pop %v533
    %v535 = vmul.f32 %v457, 1.442695
    %v536 = vpow.pop %v535
    %v537 = vmul.f32 %v458, 1.442695
    %v538 = vpow.pop %v537
    %v539 = vmul.f32 %v459, 1.442695
    %v540 = vpow.pop %v539
    %v541 = vmul.f32 %v460, 1.442695
    %v542 = vpow.pop %v541
    %v543 = vmul.f32 %v461, 1.442695
    %v544 = vpow.pop %v543
    %v545 = vmul.f32 %v462, 1.442695
    %v546 = vpow.pop %v545
    %v547 = vmul.f32 %v463, 1.442695
    %v548 = vpow.pop %v547
    %v549 = vmul.f32 %v464, 1.442695
    %v550 = vpow.pop %v549
    %v551 = vmul.f32 %v465, 1.442695
    %v552 = vpow.pop %v551
    %v553 = vmul.f32 %v466, 1.442695
    %v554 = vpow.pop %v553
    %v555 = vmul.f32 %v467, 1.442695
    %v556 = vpow.pop %v555
    %v557 = vmul.f32 %v468, 1.442695
    %v558 = vpow.pop %v557
    %v559 = vmul.f32 %v469, 1.442695
    %v560 = vpow.pop %v559
    %v561 = vmul.f32 %v470, 1.442695
    %v562 = vpow.pop %v561
    %v563 = vmul.f32 %v471, 1.442695
    %v564 = vpow.pop %v563
    %v565 = vmul.f32 %v472, 1.442695
    %v566 = vpow.pop %v565
    %v567 = vmul.f32 %v473, 1.442695
    %v568 = vpow.pop %v567
    %v569 = vmul.f32 %v474, 1.442695
    %v570 = vpow.pop %v569
    %v571 = vmul.f32 %v475, 1.442695
    %v572 = vpow.pop %v571
    %v573 = vmul.f32 %v476, 1.442695
    %v574 = vpow.pop %v573
    %v575 = vmul.f32 %v477, 1.442695
    %v576 = vpow.pop %v575
    %v577 = vmul.f32 %v478, 1.442695
    %v578 = vpow.pop %v577
    %v579 = vadd.f32 %v480, 1.0
    %v580 = vadd.f32 %v482, 1.0
    %v581 = vadd.f32 %v484, 1.0
    %v582 = vadd.f32 %v486, 1.0
    %v583 = vadd.f32 %v488, 1.0
    %v584 = vadd.f32 %v490, 1.0
    %v585 = vadd.f32 %v492, 1.0
    %v586 = vadd.f32 %v494, 1.0
    %v587 = vadd.f32 %v496, 1.0
    %v588 = vadd.f32 %v498, 1.0
    %v589 = vadd.f32 %v500, 1.0
    %v590 = vadd.f32 %v502, 1.0
    %v591 = vadd.f32 %v504, 1.0
    %v592 = vadd.f32 %v506, 1.0
    %v593 = vadd.f32 %v508, 1.0
    %v594 = vadd.f32 %v510, 1.0
    %v595 = vadd.f32 %v512, 1.0
    %v596 = vadd.f32 %v514, 1.0
    %v597 = vadd.f32 %v516, 1.0
    %v598 = vadd.f32 %v518, 1.0
    %v599 = vadd.f32 %v520, 1.0
    %v600 = vadd.f32 %v522, 1.0
    %v601 = vadd.f32 %v524, 1.0
    %v602 = vadd.f32 %v526, 1.0
    %v603 = vadd.f32 %v528, 1.0
    %v604 = vadd.f32 %v530, 1.0
    %v605 = vadd.f32 %v532, 1.0
    %v606 = vadd.f32 %v534, 1.0
    %v607 = vadd.f32 %v536, 1.0
    %v608 = vadd.f32 %v538, 1.0
    %v609 = vadd.f32 %v540, 1.0
    %v610 = vadd.f32 %v542, 1.0
    %v611 = vadd.f32 %v544, 1.0
    %v612 = vadd.f32 %v546, 1.0
    %v613 = vadd.f32 %v548, 1.0
    %v614 = vadd.f32 %v550, 1.0
    %v615 = vadd.f32 %v552, 1.0
    %v616 = vadd.f32 %v554, 1.0
    %v617 = vadd.f32 %v556, 1.0
    %v618 = vadd.f32 %v558, 1.0
    %v619 = vadd.f32 %v560, 1.0
    %v620 = vadd.f32 %v562, 1.0
    %v621 = vadd.f32 %v564, 1.0
    %v622 = vadd.f32 %v566, 1.0
    %v623 = vadd.f32 %v568, 1.0
    %v624 = vadd.f32 %v570, 1.0
    %v625 = vadd.f32 %v572, 1.0
    %v626 = vadd.f32 %v574, 1.0
    %v627 = vadd.f32 %v576, 1.0
    %v628 = vadd.f32 %v578, 1.0
    %v629 = vrcp.pop %v579
    %v630 = vrcp.pop %v580
    %v631 = vrcp.pop %v581
    %v632 = vrcp.pop %v582
    %v633 = vrcp.pop %v583
    %v634 = vrcp.pop %v584
    %v635 = vrcp.pop %v585
    %v636 = vrcp.pop %v586
    %v637 = vrcp.pop %v587
    %v638 = vrcp.pop %v588
    %v639 = vrcp.pop %v589
    %v640 = vrcp.pop %v590
    %v641 = vrcp.pop %v591
    %v642 = vrcp.pop %v592
    %v643 = vrcp.pop %v593
    %v644 = vrcp.pop %v594
    %v645 = vrcp.pop %v595
    %v646 = vrcp.pop %v596
    %v647 = vrcp.pop %v597
    %v648 = vrcp.pop %v598
    %v649 = vrcp.pop %v599
    %v650 = vrcp.pop %v600
    %v651 = vrcp.pop %v601
    %v652 = vrcp.pop %v602
    %v653 = vrcp.pop %v603
    %v654 = vrcp.pop %v604
    %v655 = vrcp.pop %v605
    %v656 = vrcp.pop %v606
    %v657 = vrcp.pop %v607
    %v658 = vrcp.pop %v608
    %v659 = vrcp.pop %v609
    %v660 = vrcp.pop %v610
    %v661 = vrcp.pop %v611
    %v662 = vrcp.pop %v612
    %v663 = vrcp.pop %v613
    %v664 = vrcp.pop %v614
    %v665 = vrcp.pop %v615
    %v666 = vrcp.pop %v616
    %v667 = vrcp.pop %v617
    %v668 = vrcp.pop %v618
    %v669 = vrcp.pop %v619
    %v670 = vrcp.pop %v620
    %v671 = vrcp.pop %v621
    %v672 = vrcp.pop %v622
    %v673 = vrcp.pop %v623
    %v674 = vrcp.pop %v624
    %v675 = vrcp.pop %v625
    %v676 = vrcp.pop %v626
    %v677 = vrcp.pop %v627
    %v678 = vrcp.pop %v628
    %v679 = vmul.f32 %v231, %v629
    %v680 = vmul.f32 %v234, %v630
    %v681 = vmul.f32 %v239, %v631
    %v682 = vmul.f32 %v242, %v632
    %v683 = vmul.f32 %v247, %v633
    %v684 = vmul.f32 %v250, %v634
    %v685 = vmul.f32 %v255, %v635
    %v686 = vmul.f32 %v258, %v636
    %v687 = vmul.f32 %v263, %v637
    %v688 = vmul.f32 %v266, %v638
    %v689 = vmul.f32 %v271, %v639
    %v690 = vmul.f32 %v274, %v640
    %v691 = vmul.f32 %v279, %v641
    %v692 = vmul.f32 %v282, %v642
    %v693 = vmul.f32 %v287, %v643
    %v694 = vmul.f32 %v290, %v644
    %v695 = vmul.f32 %v295, %v645
    %v696 = vmul.f32 %v298, %v646
    %v697 = vmul.f32 %v303, %v647
    %v698 = vmul.f32 %v306, %v648
    %v699 = vmul.f32 %v311, %v649
    %v700 = vmul.f32 %v314, %v650
    %v701 = vmul.f32 %v319, %v651
    %v702 = vmul.f32 %v322, %v652
    %v703 = vmul.f32 %v327, %v653
    %v704 = vmul.f32 %v330, %v654
    %v705 = vmul.f32 %v335, %v655
    %v706 = vmul.f32 %v338, %v656
    %v707 = vmul.f32 %v343, %v657
    %v708 = vmul.f32 %v346, %v658
    %v709 = vmul.f32 %v351, %v659
    %v710 = vmul.f32 %v354, %v660
    %v711 = vmul.f32 %v359, %v661
    %v712 = vmul.f32 %v362, %v662
    %v713 = vmul.f32 %v367, %v663
    %v714 = vmul.f32 %v370, %v664
    %v715 = vmul.f32 %v375, %v665
    %v716 = vmul.f32 %v378, %v666
    %v717 = vmul.f32 %v383, %v667
    %v718 = vmul.f32 %v386, %v668
    %v719 = vmul.f32 %v391, %v669
    %v720 = vmul.f32 %v394, %v670
    %v721 = vmul.f32 %v399, %v671
    %v722 = vmul.f32 %v402, %v672
    %v723 = vmul.f32 %v407, %v673
    %v724 = vmul.f32 %v410, %v674
    %v725 = vmul.f32 %v415, %v675
    %v726 = vmul.f32 %v418, %v676
    %v727 = vmul.f32 %v423, %v677
    %v728 = vmul.f32 %v426, %v678
    %v729 = vpack.c.bf16 %v680, %v679
    %v730 = vpack.c.bf16 %v682, %v681
    %v731 = vpack.c.bf16 %v684, %v683
    %v732 = vpack.c.bf16 %v686, %v685
    %v733 = vpack.c.bf16 %v688, %v687
    %v734 = vpack.c.bf16 %v690, %v689
    %v735 = vpack.c.bf16 %v692, %v691
    %v736 = vpack.c.bf16 %v694, %v693
    %v737 = vpack.c.bf16 %v696, %v695
    %v738 = vpack.c.bf16 %v698, %v697
    %v739 = vpack.c.bf16 %v700, %v699
    %v740 = vpack.c.bf16 %v702, %v701
    %v741 = vpack.c.bf16 %v704, %v703
    %v742 = vpack.c.bf16 %v706, %v705
    %v743 = vpack.c.bf16 %v708, %v707
    %v744 = vpack.c.bf16 %v710, %v709
    %v745 = vpack.c.bf16 %v712, %v711
    %v746 = vpack.c.bf16 %v714, %v713
    %v747 = vpack.c.bf16 %v716, %v715
    %v748 = vpack.c.bf16 %v718, %v717
    %v749 = vpack.c.bf16 %v720, %v719
    %v750 = vpack.c.bf16 %v722, %v721
    %v751 = vpack.c.bf16 %v724, %v723
    %v752 = vpack.c.bf16 %v726, %v725
    %v753 = vpack.c.bf16 %v728, %v727
    %v754 = vld [vmem:[%s3] sm:$0xf]
    %v755 = vld [vmem:[%s3 + $0x4] sm:$0xf]
    %v756 = vld [vmem:[%s3 + $0x8] sm:$0xf]
    %v757 = vld [vmem:[%s3 + $0xc] sm:$0xf]
    %v758 = vld [vmem:[%s3 + $0x10] sm:$0xf]
    %v759 = vld [vmem:[%s3 + $0x14] sm:$0xf]
    %v760 = vld [vmem:[%s3 + $0x18] sm:$0xf]
    %v761 = vld [vmem:[%s3 + $0x1c] sm:$0xf]
    %v762 = vld [vmem:[%s3 + $0x20] sm:$0xf]
    %v763 = vld [vmem:[%s3 + $0x24] sm:$0xf]
    %v764 = vld [vmem:[%s3 + $0x28] sm:$0xf]
    %v765 = vld [vmem:[%s3 + $0x2c] sm:$0xf]
    %v766 = vld [vmem:[%s3 + $0x30] sm:$0xf]
    %v767 = vld [vmem:[%s3 + $0x34] sm:$0xf]
    %v768 = vld [vmem:[%s3 + $0x38] sm:$0xf]
    %v769 = vld [vmem:[%s3 + $0x3c] sm:$0xf]
    %v770 = vld [vmem:[%s4] sm:$0x1]
    %v772 = vlaneseq
    %v773 = vshrl.u32 %v772, 7
    %v774 = vsub.s32 0, %v773
    %v775 = vrot.slane %v770, %v774
    %v793 = vunpack.c.l.b16 %v754
    %v794 = vunpack.c.l.b16 %v755
    %v795 = vunpack.c.l.b16 %v756
    %v796 = vunpack.c.l.b16 %v757
    %v797 = vunpack.c.l.b16 %v758
    %v798 = vunpack.c.l.b16 %v759
    %v799 = vunpack.c.l.b16 %v760
    %v800 = vunpack.c.l.b16 %v761
    %v801 = vunpack.c.l.b16 %v762
    %v802 = vunpack.c.l.b16 %v763
    %v803 = vunpack.c.l.b16 %v764
    %v804 = vunpack.c.l.b16 %v765
    %v805 = vunpack.c.l.b16 %v766
    %v806 = vunpack.c.l.b16 %v767
    %v807 = vunpack.c.l.b16 %v768
    %v808 = vunpack.c.l.b16 %v769
    %v809 = vpack.c.b16 %v794, %v793
    %v810 = vpack.c.b16 %v796, %v795
    %v811 = vpack.c.b16 %v798, %v797
    %v812 = vpack.c.b16 %v800, %v799
    %v813 = vpack.c.b16 %v802, %v801
    %v814 = vpack.c.b16 %v804, %v803
    %v815 = vpack.c.b16 %v806, %v805
    %v816 = vpack.c.b16 %v808, %v807
    %825 = vmatprep.subr.bf16.mxu0 0
    %826 = vmatpush1.bf16.msra.mxu0 %v809
    %827 = vmatprep.subr.bf16.mxu0 0
    %828 = vmatpush1.bf16.msra.mxu0 %v810
    %829 = vmatprep.subr.bf16.mxu0 0
    %830 = vmatpush1.bf16.msra.mxu0 %v811
    %831 = vmatprep.subr.bf16.mxu0 0
    %832 = vmatpush1.bf16.msra.mxu0 %v812
    %833 = vmatprep.subr.bf16.mxu0 0
    %834 = vmatpush1.bf16.msra.mxu0 %v813
    %835 = vmatprep.subr.bf16.mxu0 0
    %836 = vmatpush1.bf16.msra.mxu0 %v814
    %837 = vmatprep.subr.bf16.mxu0 0
    %838 = vmatpush1.bf16.msra.mxu0 %v815
    %839 = vmatprep.subr.bf16.mxu0 0
    %840 = vmatpush1.bf16.msra.mxu0 %v816
    %841 = vmatprep.subr.bf16.mxu0 0
    %842 = vmatpush1.bf16.msra.mxu0 0
    %843 = vmatprep.subr.bf16.mxu0 0
    %844 = vmatpush1.bf16.msra.mxu0 0
    %845 = vmatprep.subr.bf16.mxu0 0
    %846 = vmatpush1.bf16.msra.mxu0 0
    %847 = vmatprep.subr.bf16.mxu0 0
    %848 = vmatpush1.bf16.msra.mxu0 0
    %849 = vmatprep.subr.bf16.mxu0 0
    %850 = vmatpush1.bf16.msra.mxu0 0
    %851 = vmatprep.subr.bf16.mxu0 0
    %852 = vmatpush1.bf16.msra.mxu0 0
    %853 = vmatprep.subr.bf16.mxu0 0
    %854 = vmatpush1.bf16.msra.mxu0 0
    %855 = vmatprep.subr.bf16.mxu0 0
    %856 = vmatpush1.bf16.msra.mxu0 0
    %857 = vmatprep.mubr.bf16.mxu0 0
    %858 = vmatmul.mubr.bf16.gmra.mrb[0].mxu0 %v729
    %v859 = vpop.f32.mrb[0].mxu0
    %v860 = vadd.f32 %v775, %v859
    %v861 = vpop.f32.mrb[0].mxu0
    %v862 = vpop.f32.mrb[0].mxu0
    %v863 = vadd.f32 %v775, %v862
    %v864 = vpop.f32.mrb[0].mxu0
    %865 = vmatprep.mubr.bf16.mxu0 0
    %866 = vmatmul.mubr.bf16.gmra.mrb[0].mxu0 %v730
    %v867 = vpop.f32.mrb[0].mxu0
    %v868 = vadd.f32 %v775, %v867
    %v869 = vpop.f32.mrb[0].mxu0
    %v870 = vpop.f32.mrb[0].mxu0
    %v871 = vadd.f32 %v775, %v870
    %v872 = vpop.f32.mrb[0].mxu0
    %873 = vmatprep.mubr.bf16.mxu0 0
    %874 = vmatmul.mubr.bf16.gmra.mrb[0].mxu0 %v731
    %v875 = vpop.f32.mrb[0].mxu0
    %v876 = vadd.f32 %v775, %v875
    %v877 = vpop.f32.mrb[0].mxu0
    %v878 = vpop.f32.mrb[0].mxu0
    %v879 = vadd.f32 %v775, %v878
    %v880 = vpop.f32.mrb[0].mxu0
    %881 = vmatprep.mubr.bf16.mxu0 0
    %882 = vmatmul.mubr.bf16.gmra.mrb[0].mxu0 %v732
    %v883 = vpop.f32.mrb[0].mxu0
    %v884 = vadd.f32 %v775, %v883
    %v885 = vpop.f32.mrb[0].mxu0
    %v886 = vpop.f32.mrb[0].mxu0
    %v887 = vadd.f32 %v775, %v886
    %v888 = vpop.f32.mrb[0].mxu0
    %889 = vmatprep.mubr.bf16.mxu0 0
    %890 = vmatmul.mubr.bf16.gmra.mrb[0].mxu0 %v733
    %v891 = vpop.f32.mrb[0].mxu0
    %v892 = vadd.f32 %v775, %v891
    %v893 = vpop.f32.mrb[0].mxu0
    %v894 = vpop.f32.mrb[0].mxu0
    %v895 = vadd.f32 %v775, %v894
    %v896 = vpop.f32.mrb[0].mxu0
    %897 = vmatprep.mubr.bf16.mxu0 0
    %898 = vmatmul.mubr.bf16.gmra.mrb[0].mxu0 %v734
    %v899 = vpop.f32.mrb[0].mxu0
    %v900 = vadd.f32 %v775, %v899
    %v901 = vpop.f32.mrb[0].mxu0
    %v902 = vpop.f32.mrb[0].mxu0
    %v903 = vadd.f32 %v775, %v902
    %v904 = vpop.f32.mrb[0].mxu0
    %905 = vmatprep.mubr.bf16.mxu0 0
    %906 = vmatmul.mubr.bf16.gmra.mrb[0].mxu0 %v735
    %v907 = vpop.f32.mrb[0].mxu0
    %v908 = vadd.f32 %v775, %v907
    %v909 = vpop.f32.mrb[0].mxu0
    %v910 = vpop.f32.mrb[0].mxu0
    %v911 = vadd.f32 %v775, %v910
    %v912 = vpop.f32.mrb[0].mxu0
    %913 = vmatprep.mubr.bf16.mxu0 0
    %914 = vmatmul.mubr.bf16.gmra.mrb[0].mxu0 %v736
    %v915 = vpop.f32.mrb[0].mxu0
    %v916 = vadd.f32 %v775, %v915
    %v917 = vpop.f32.mrb[0].mxu0
    %v918 = vpop.f32.mrb[0].mxu0
    %v919 = vadd.f32 %v775, %v918
    %v920 = vpop.f32.mrb[0].mxu0
    %921 = vmatprep.mubr.bf16.mxu0 0
    %922 = vmatmul.mubr.bf16.gmra.mrb[0].mxu0 %v737
    %v923 = vpop.f32.mrb[0].mxu0
    %v924 = vadd.f32 %v775, %v923
    %v925 = vpop.f32.mrb[0].mxu0
    %v926 = vpop.f32.mrb[0].mxu0
    %v927 = vadd.f32 %v775, %v926
    %v928 = vpop.f32.mrb[0].mxu0
    %929 = vmatprep.mubr.bf16.mxu0 0
    %930 = vmatmul.mubr.bf16.gmra.mrb[0].mxu0 %v738
    %v931 = vpop.f32.mrb[0].mxu0
    %v932 = vadd.f32 %v775, %v931
    %v933 = vpop.f32.mrb[0].mxu0
    %v934 = vpop.f32.mrb[0].mxu0
    %v935 = vadd.f32 %v775, %v934
    %v936 = vpop.f32.mrb[0].mxu0
    %937 = vmatprep.mubr.bf16.mxu0 0
    %938 = vmatmul.mubr.bf16.gmra.mrb[0].mxu0 %v739
    %v939 = vpop.f32.mrb[0].mxu0
    %v940 = vadd.f32 %v775, %v939
    %v941 = vpop.f32.mrb[0].mxu0
    %v942 = vpop.f32.mrb[0].mxu0
    %v943 = vadd.f32 %v775, %v942
    %v944 = vpop.f32.mrb[0].mxu0
    %945 = vmatprep.mubr.bf16.mxu0 0
    %946 = vmatmul.mubr.bf16.gmra.mrb[0].mxu0 %v740
    %v947 = vpop.f32.mrb[0].mxu0
    %v948 = vadd.f32 %v775, %v947
    %v949 = vpop.f32.mrb[0].mxu0
    %v950 = vpop.f32.mrb[0].mxu0
    %v951 = vadd.f32 %v775, %v950
    %v952 = vpop.f32.mrb[0].mxu0
    %953 = vmatprep.mubr.bf16.mxu0 0
    %954 = vmatmul.mubr.bf16.gmra.mrb[0].mxu0 %v741
    %v955 = vpop.f32.mrb[0].mxu0
    %v956 = vadd.f32 %v775, %v955
    %v957 = vpop.f32.mrb[0].mxu0
    %v958 = vpop.f32.mrb[0].mxu0
    %v959 = vadd.f32 %v775, %v958
    %v960 = vpop.f32.mrb[0].mxu0
    %961 = vmatprep.mubr.bf16.mxu0 0
    %962 = vmatmul.mubr.bf16.gmra.mrb[0].mxu0 %v742
    %v963 = vpop.f32.mrb[0].mxu0
    %v964 = vadd.f32 %v775, %v963
    %v965 = vpop.f32.mrb[0].mxu0
    %v966 = vpop.f32.mrb[0].mxu0
    %v967 = vadd.f32 %v775, %v966
    %v968 = vpop.f32.mrb[0].mxu0
    %969 = vmatprep.mubr.bf16.mxu0 0
    %970 = vmatmul.mubr.bf16.gmra.mrb[0].mxu0 %v743
    %v971 = vpop.f32.mrb[0].mxu0
    %v972 = vadd.f32 %v775, %v971
    %v973 = vpop.f32.mrb[0].mxu0
    %v974 = vpop.f32.mrb[0].mxu0
    %v975 = vadd.f32 %v775, %v974
    %v976 = vpop.f32.mrb[0].mxu0
    %977 = vmatprep.mubr.bf16.mxu0 0
    %978 = vmatmul.mubr.bf16.gmra.mrb[0].mxu0 %v744
    %v979 = vpop.f32.mrb[0].mxu0
    %v980 = vadd.f32 %v775, %v979
    %v981 = vpop.f32.mrb[0].mxu0
    %v982 = vpop.f32.mrb[0].mxu0
    %v983 = vadd.f32 %v775, %v982
    %v984 = vpop.f32.mrb[0].mxu0
    %985 = vmatprep.mubr.bf16.mxu0 0
    %986 = vmatmul.mubr.bf16.gmra.mrb[0].mxu0 %v745
    %v987 = vpop.f32.mrb[0].mxu0
    %v988 = vadd.f32 %v775, %v987
    %v989 = vpop.f32.mrb[0].mxu0
    %v990 = vpop.f32.mrb[0].mxu0
    %v991 = vadd.f32 %v775, %v990
    %v992 = vpop.f32.mrb[0].mxu0
    %993 = vmatprep.mubr.bf16.mxu0 0
    %994 = vmatmul.mubr.bf16.gmra.mrb[0].mxu0 %v746
    %v995 = vpop.f32.mrb[0].mxu0
    %v996 = vadd.f32 %v775, %v995
    %v997 = vpop.f32.mrb[0].mxu0
    %v998 = vpop.f32.mrb[0].mxu0
    %v999 = vadd.f32 %v775, %v998
    %v1000 = vpop.f32.mrb[0].mxu0
    %1001 = vmatprep.mubr.bf16.mxu0 0
    %1002 = vmatmul.mubr.bf16.gmra.mrb[0].mxu0 %v747
    %v1003 = vpop.f32.mrb[0].mxu0
    %v1004 = vadd.f32 %v775, %v1003
    %v1005 = vpop.f32.mrb[0].mxu0
    %v1006 = vpop.f32.mrb[0].mxu0
    %v1007 = vadd.f32 %v775, %v1006
    %v1008 = vpop.f32.mrb[0].mxu0
    %1009 = vmatprep.mubr.bf16.mxu0 0
    %1010 = vmatmul.mubr.bf16.gmra.mrb[0].mxu0 %v748
    %v1011 = vpop.f32.mrb[0].mxu0
    %v1012 = vadd.f32 %v775, %v1011
    %v1013 = vpop.f32.mrb[0].mxu0
    %v1014 = vpop.f32.mrb[0].mxu0
    %v1015 = vadd.f32 %v775, %v1014
    %v1016 = vpop.f32.mrb[0].mxu0
    %1017 = vmatprep.mubr.bf16.mxu0 0
    %1018 = vmatmul.mubr.bf16.gmra.mrb[0].mxu0 %v749
    %v1019 = vpop.f32.mrb[0].mxu0
    %v1020 = vadd.f32 %v775, %v1019
    %v1021 = vpop.f32.mrb[0].mxu0
    %v1022 = vpop.f32.mrb[0].mxu0
    %v1023 = vadd.f32 %v775, %v1022
    %v1024 = vpop.f32.mrb[0].mxu0
    %1025 = vmatprep.mubr.bf16.mxu0 0
    %1026 = vmatmul.mubr.bf16.gmra.mrb[0].mxu0 %v750
    %v1027 = vpop.f32.mrb[0].mxu0
    %v1028 = vadd.f32 %v775, %v1027
    %v1029 = vpop.f32.mrb[0].mxu0
    %v1030 = vpop.f32.mrb[0].mxu0
    %v1031 = vadd.f32 %v775, %v1030
    %v1032 = vpop.f32.mrb[0].mxu0
    %1033 = vmatprep.mubr.bf16.mxu0 0
    %1034 = vmatmul.mubr.bf16.gmra.mrb[0].mxu0 %v751
    %v1035 = vpop.f32.mrb[0].mxu0
    %v1036 = vadd.f32 %v775, %v1035
    %v1037 = vpop.f32.mrb[0].mxu0
    %v1038 = vpop.f32.mrb[0].mxu0
    %v1039 = vadd.f32 %v775, %v1038
    %v1040 = vpop.f32.mrb[0].mxu0
    %1041 = vmatprep.mubr.bf16.mxu0 0
    %1042 = vmatmul.mubr.bf16.gmra.mrb[0].mxu0 %v752
    %v1043 = vpop.f32.mrb[0].mxu0
    %v1044 = vadd.f32 %v775, %v1043
    %v1045 = vpop.f32.mrb[0].mxu0
    %v1046 = vpop.f32.mrb[0].mxu0
    %v1047 = vadd.f32 %v775, %v1046
    %v1048 = vpop.f32.mrb[0].mxu0
    %1049 = vmatprep.mubr.bf16.mxu0 0
    %1050 = vmatmul.mubr.bf16.gmra.mrb[0].mxu0 %v753
    %v1051 = vpop.f32.mrb[0].mxu0
    %v1052 = vadd.f32 %v775, %v1051
    %v1053 = vpop.f32.mrb[0].mxu0
    %v1054 = vpop.f32.mrb[0].mxu0
    %v1055 = vadd.f32 %v775, %v1054
    %v1056 = vpop.f32.mrb[0].mxu0
    %1057 = vdwg.mxu0
    %v1058 = vsub.f32 0.0, %v860
    %v1059 = vsub.f32 0.0, %v863
    %v1060 = vsub.f32 0.0, %v868
    %v1061 = vsub.f32 0.0, %v871
    %v1062 = vsub.f32 0.0, %v876
    %v1063 = vsub.f32 0.0, %v879
    %v1064 = vsub.f32 0.0, %v884
    %v1065 = vsub.f32 0.0, %v887
    %v1066 = vsub.f32 0.0, %v892
    %v1067 = vsub.f32 0.0, %v895
    %v1068 = vsub.f32 0.0, %v900
    %v1069 = vsub.f32 0.0, %v903
    %v1070 = vsub.f32 0.0, %v908
    %v1071 = vsub.f32 0.0, %v911
    %v1072 = vsub.f32 0.0, %v916
    %v1073 = vsub.f32 0.0, %v919
    %v1074 = vsub.f32 0.0, %v924
    %v1075 = vsub.f32 0.0, %v927
    %v1076 = vsub.f32 0.0, %v932
    %v1077 = vsub.f32 0.0, %v935
    %v1078 = vsub.f32 0.0, %v940
    %v1079 = vsub.f32 0.0, %v943
    %v1080 = vsub.f32 0.0, %v948
    %v1081 = vsub.f32 0.0, %v951
    %v1082 = vsub.f32 0.0, %v956
    %v1083 = vsub.f32 0.0, %v959
    %v1084 = vsub.f32 0.0, %v964
    %v1085 = vsub.f32 0.0, %v967
    %v1086 = vsub.f32 0.0, %v972
    %v1087 = vsub.f32 0.0, %v975
    %v1088 = vsub.f32 0.0, %v980
    %v1089 = vsub.f32 0.0, %v983
    %v1090 = vsub.f32 0.0, %v988
    %v1091 = vsub.f32 0.0, %v991
    %v1092 = vsub.f32 0.0, %v996
    %v1093 = vsub.f32 0.0, %v999
    %v1094 = vsub.f32 0.0, %v1004
    %v1095 = vsub.f32 0.0, %v1007
    %v1096 = vsub.f32 0.0, %v1012
    %v1097 = vsub.f32 0.0, %v1015
    %v1098 = vsub.f32 0.0, %v1020
    %v1099 = vsub.f32 0.0, %v1023
    %v1100 = vsub.f32 0.0, %v1028
    %v1101 = vsub.f32 0.0, %v1031
    %v1102 = vsub.f32 0.0, %v1036
    %v1103 = vsub.f32 0.0, %v1039
    %v1104 = vsub.f32 0.0, %v1044
    %v1105 = vsub.f32 0.0, %v1047
    %v1106 = vsub.f32 0.0, %v1052
    %v1107 = vsub.f32 0.0, %v1055
    %v1108 = vmul.f32 %v1058, 1.442695
    %v1109 = vpow.pop %v1108
    %v1110 = vmul.f32 %v1059, 1.442695
    %v1111 = vpow.pop %v1110
    %v1112 = vmul.f32 %v1060, 1.442695
    %v1113 = vpow.pop %v1112
    %v1114 = vmul.f32 %v1061, 1.442695
    %v1115 = vpow.pop %v1114
    %v1116 = vmul.f32 %v1062, 1.442695
    %v1117 = vpow.pop %v1116
    %v1118 = vmul.f32 %v1063, 1.442695
    %v1119 = vpow.pop %v1118
    %v1120 = vmul.f32 %v1064, 1.442695
    %v1121 = vpow.pop %v1120
    %v1122 = vmul.f32 %v1065, 1.442695
    %v1123 = vpow.pop %v1122
    %v1124 = vmul.f32 %v1066, 1.442695
    %v1125 = vpow.pop %v1124
    %v1126 = vmul.f32 %v1067, 1.442695
    %v1127 = vpow.pop %v1126
    %v1128 = vmul.f32 %v1068, 1.442695
    %v1129 = vpow.pop %v1128
    %v1130 = vmul.f32 %v1069, 1.442695
    %v1131 = vpow.pop %v1130
    %v1132 = vmul.f32 %v1070, 1.442695
    %v1133 = vpow.pop %v1132
    %v1134 = vmul.f32 %v1071, 1.442695
    %v1135 = vpow.pop %v1134
    %v1136 = vmul.f32 %v1072, 1.442695
    %v1137 = vpow.pop %v1136
    %v1138 = vmul.f32 %v1073, 1.442695
    %v1139 = vpow.pop %v1138
    %v1140 = vmul.f32 %v1074, 1.442695
    %v1141 = vpow.pop %v1140
    %v1142 = vmul.f32 %v1075, 1.442695
    %v1143 = vpow.pop %v1142
    %v1144 = vmul.f32 %v1076, 1.442695
    %v1145 = vpow.pop %v1144
    %v1146 = vmul.f32 %v1077, 1.442695
    %v1147 = vpow.pop %v1146
    %v1148 = vmul.f32 %v1078, 1.442695
    %v1149 = vpow.pop %v1148
    %v1150 = vmul.f32 %v1079, 1.442695
    %v1151 = vpow.pop %v1150
    %v1152 = vmul.f32 %v1080, 1.442695
    %v1153 = vpow.pop %v1152
    %v1154 = vmul.f32 %v1081, 1.442695
    %v1155 = vpow.pop %v1154
    %v1156 = vmul.f32 %v1082, 1.442695
    %v1157 = vpow.pop %v1156
    %v1158 = vmul.f32 %v1083, 1.442695
    %v1159 = vpow.pop %v1158
    %v1160 = vmul.f32 %v1084, 1.442695
    %v1161 = vpow.pop %v1160
    %v1162 = vmul.f32 %v1085, 1.442695
    %v1163 = vpow.pop %v1162
    %v1164 = vmul.f32 %v1086, 1.442695
    %v1165 = vpow.pop %v1164
    %v1166 = vmul.f32 %v1087, 1.442695
    %v1167 = vpow.pop %v1166
    %v1168 = vmul.f32 %v1088, 1.442695
    %v1169 = vpow.pop %v1168
    %v1170 = vmul.f32 %v1089, 1.442695
    %v1171 = vpow.pop %v1170
    %v1172 = vmul.f32 %v1090, 1.442695
    %v1173 = vpow.pop %v1172
    %v1174 = vmul.f32 %v1091, 1.442695
    %v1175 = vpow.pop %v1174
    %v1176 = vmul.f32 %v1092, 1.442695
    %v1177 = vpow.pop %v1176
    %v1178 = vmul.f32 %v1093, 1.442695
    %v1179 = vpow.pop %v1178
    %v1180 = vmul.f32 %v1094, 1.442695
    %v1181 = vpow.pop %v1180
    %v1182 = vmul.f32 %v1095, 1.442695
    %v1183 = vpow.pop %v1182
    %v1184 = vmul.f32 %v1096, 1.442695
    %v1185 = vpow.pop %v1184
    %v1186 = vmul.f32 %v1097, 1.442695
    %v1187 = vpow.pop %v1186
    %v1188 = vmul.f32 %v1098, 1.442695
    %v1189 = vpow.pop %v1188
    %v1190 = vmul.f32 %v1099, 1.442695
    %v1191 = vpow.pop %v1190
    %v1192 = vmul.f32 %v1100, 1.442695
    %v1193 = vpow.pop %v1192
    %v1194 = vmul.f32 %v1101, 1.442695
    %v1195 = vpow.pop %v1194
    %v1196 = vmul.f32 %v1102, 1.442695
    %v1197 = vpow.pop %v1196
    %v1198 = vmul.f32 %v1103, 1.442695
    %v1199 = vpow.pop %v1198
    %v1200 = vmul.f32 %v1104, 1.442695
    %v1201 = vpow.pop %v1200
    %v1202 = vmul.f32 %v1105, 1.442695
    %v1203 = vpow.pop %v1202
    %v1204 = vmul.f32 %v1106, 1.442695
    %v1205 = vpow.pop %v1204
    %v1206 = vmul.f32 %v1107, 1.442695
    %v1207 = vpow.pop %v1206
    %v1208 = vadd.f32 %v1109, 1.0
    %v1209 = vadd.f32 %v1111, 1.0
    %v1210 = vadd.f32 %v1113, 1.0
    %v1211 = vadd.f32 %v1115, 1.0
    %v1212 = vadd.f32 %v1117, 1.0
    %v1213 = vadd.f32 %v1119, 1.0
    %v1214 = vadd.f32 %v1121, 1.0
    %v1215 = vadd.f32 %v1123, 1.0
    %v1216 = vadd.f32 %v1125, 1.0
    %v1217 = vadd.f32 %v1127, 1.0
    %v1218 = vadd.f32 %v1129, 1.0
    %v1219 = vadd.f32 %v1131, 1.0
    %v1220 = vadd.f32 %v1133, 1.0
    %v1221 = vadd.f32 %v1135, 1.0
    %v1222 = vadd.f32 %v1137, 1.0
    %v1223 = vadd.f32 %v1139, 1.0
    %v1224 = vadd.f32 %v1141, 1.0
    %v1225 = vadd.f32 %v1143, 1.0
    %v1226 = vadd.f32 %v1145, 1.0
    %v1227 = vadd.f32 %v1147, 1.0
    %v1228 = vadd.f32 %v1149, 1.0
    %v1229 = vadd.f32 %v1151, 1.0
    %v1230 = vadd.f32 %v1153, 1.0
    %v1231 = vadd.f32 %v1155, 1.0
    %v1232 = vadd.f32 %v1157, 1.0
    %v1233 = vadd.f32 %v1159, 1.0
    %v1234 = vadd.f32 %v1161, 1.0
    %v1235 = vadd.f32 %v1163, 1.0
    %v1236 = vadd.f32 %v1165, 1.0
    %v1237 = vadd.f32 %v1167, 1.0
    %v1238 = vadd.f32 %v1169, 1.0
    %v1239 = vadd.f32 %v1171, 1.0
    %v1240 = vadd.f32 %v1173, 1.0
    %v1241 = vadd.f32 %v1175, 1.0
    %v1242 = vadd.f32 %v1177, 1.0
    %v1243 = vadd.f32 %v1179, 1.0
    %v1244 = vadd.f32 %v1181, 1.0
    %v1245 = vadd.f32 %v1183, 1.0
    %v1246 = vadd.f32 %v1185, 1.0
    %v1247 = vadd.f32 %v1187, 1.0
    %v1248 = vadd.f32 %v1189, 1.0
    %v1249 = vadd.f32 %v1191, 1.0
    %v1250 = vadd.f32 %v1193, 1.0
    %v1251 = vadd.f32 %v1195, 1.0
    %v1252 = vadd.f32 %v1197, 1.0
    %v1253 = vadd.f32 %v1199, 1.0
    %v1254 = vadd.f32 %v1201, 1.0
    %v1255 = vadd.f32 %v1203, 1.0
    %v1256 = vadd.f32 %v1205, 1.0
    %v1257 = vadd.f32 %v1207, 1.0
    %v1258 = vrcp.pop %v1208
    %v1259 = vrcp.pop %v1209
    %v1260 = vrcp.pop %v1210
    %v1261 = vrcp.pop %v1211
    %v1262 = vrcp.pop %v1212
    %v1263 = vrcp.pop %v1213
    %v1264 = vrcp.pop %v1214
    %v1265 = vrcp.pop %v1215
    %v1266 = vrcp.pop %v1216
    %v1267 = vrcp.pop %v1217
    %v1268 = vrcp.pop %v1218
    %v1269 = vrcp.pop %v1219
    %v1270 = vrcp.pop %v1220
    %v1271 = vrcp.pop %v1221
    %v1272 = vrcp.pop %v1222
    %v1273 = vrcp.pop %v1223
    %v1274 = vrcp.pop %v1224
    %v1275 = vrcp.pop %v1225
    %v1276 = vrcp.pop %v1226
    %v1277 = vrcp.pop %v1227
    %v1278 = vrcp.pop %v1228
    %v1279 = vrcp.pop %v1229
    %v1280 = vrcp.pop %v1230
    %v1281 = vrcp.pop %v1231
    %v1282 = vrcp.pop %v1232
    %v1283 = vrcp.pop %v1233
    %v1284 = vrcp.pop %v1234
    %v1285 = vrcp.pop %v1235
    %v1286 = vrcp.pop %v1236
    %v1287 = vrcp.pop %v1237
    %v1288 = vrcp.pop %v1238
    %v1289 = vrcp.pop %v1239
    %v1290 = vrcp.pop %v1240
    %v1291 = vrcp.pop %v1241
    %v1292 = vrcp.pop %v1242
    %v1293 = vrcp.pop %v1243
    %v1294 = vrcp.pop %v1244
    %v1295 = vrcp.pop %v1245
    %v1296 = vrcp.pop %v1246
    %v1297 = vrcp.pop %v1247
    %v1298 = vrcp.pop %v1248
    %v1299 = vrcp.pop %v1249
    %v1300 = vrcp.pop %v1250
    %v1301 = vrcp.pop %v1251
    %v1302 = vrcp.pop %v1252
    %v1303 = vrcp.pop %v1253
    %v1304 = vrcp.pop %v1254
    %v1305 = vrcp.pop %v1255
    %v1306 = vrcp.pop %v1256
    %v1307 = vrcp.pop %v1257
    %v1308 = vmul.f32 %v860, %v1258
    %v1309 = vmul.f32 %v863, %v1259
    %v1310 = vmul.f32 %v868, %v1260
    %v1311 = vmul.f32 %v871, %v1261
    %v1312 = vmul.f32 %v876, %v1262
    %v1313 = vmul.f32 %v879, %v1263
    %v1314 = vmul.f32 %v884, %v1264
    %v1315 = vmul.f32 %v887, %v1265
    %v1316 = vmul.f32 %v892, %v1266
    %v1317 = vmul.f32 %v895, %v1267
    %v1318 = vmul.f32 %v900, %v1268
    %v1319 = vmul.f32 %v903, %v1269
    %v1320 = vmul.f32 %v908, %v1270
    %v1321 = vmul.f32 %v911, %v1271
    %v1322 = vmul.f32 %v916, %v1272
    %v1323 = vmul.f32 %v919, %v1273
    %v1324 = vmul.f32 %v924, %v1274
    %v1325 = vmul.f32 %v927, %v1275
    %v1326 = vmul.f32 %v932, %v1276
    %v1327 = vmul.f32 %v935, %v1277
    %v1328 = vmul.f32 %v940, %v1278
    %v1329 = vmul.f32 %v943, %v1279
    %v1330 = vmul.f32 %v948, %v1280
    %v1331 = vmul.f32 %v951, %v1281
    %v1332 = vmul.f32 %v956, %v1282
    %v1333 = vmul.f32 %v959, %v1283
    %v1334 = vmul.f32 %v964, %v1284
    %v1335 = vmul.f32 %v967, %v1285
    %v1336 = vmul.f32 %v972, %v1286
    %v1337 = vmul.f32 %v975, %v1287
    %v1338 = vmul.f32 %v980, %v1288
    %v1339 = vmul.f32 %v983, %v1289
    %v1340 = vmul.f32 %v988, %v1290
    %v1341 = vmul.f32 %v991, %v1291
    %v1342 = vmul.f32 %v996, %v1292
    %v1343 = vmul.f32 %v999, %v1293
    %v1344 = vmul.f32 %v1004, %v1294
    %v1345 = vmul.f32 %v1007, %v1295
    %v1346 = vmul.f32 %v1012, %v1296
    %v1347 = vmul.f32 %v1015, %v1297
    %v1348 = vmul.f32 %v1020, %v1298
    %v1349 = vmul.f32 %v1023, %v1299
    %v1350 = vmul.f32 %v1028, %v1300
    %v1351 = vmul.f32 %v1031, %v1301
    %v1352 = vmul.f32 %v1036, %v1302
    %v1353 = vmul.f32 %v1039, %v1303
    %v1354 = vmul.f32 %v1044, %v1304
    %v1355 = vmul.f32 %v1047, %v1305
    %v1356 = vmul.f32 %v1052, %v1306
    %v1357 = vmul.f32 %v1055, %v1307
    %1358 = vst [vmem:[#allocation2] sm:$0xff] %v1308
    %1359 = vst [vmem:[#allocation2 + $0x8] sm:$0xff] %v1309
    %1360 = vst [vmem:[#allocation2 + $0x10] sm:$0xff] %v1310
    %1361 = vst [vmem:[#allocation2 + $0x18] sm:$0xff] %v1311
    %1362 = vst [vmem:[#allocation2 + $0x20] sm:$0xff] %v1312
    %1363 = vst [vmem:[#allocation2 + $0x28] sm:$0xff] %v1313
    %1364 = vst [vmem:[#allocation2 + $0x30] sm:$0xff] %v1314
    %1365 = vst [vmem:[#allocation2 + $0x38] sm:$0xff] %v1315
    %1366 = vst [vmem:[#allocation2 + $0x40] sm:$0xff] %v1316
    %1367 = vst [vmem:[#allocation2 + $0x48] sm:$0xff] %v1317
    %1368 = vst [vmem:[#allocation2 + $0x50] sm:$0xff] %v1318
    %1369 = vst [vmem:[#allocation2 + $0x58] sm:$0xff] %v1319
    %1370 = vst [vmem:[#allocation2 + $0x60] sm:$0xff] %v1320
    %1371 = vst [vmem:[#allocation2 + $0x68] sm:$0xff] %v1321
    %1372 = vst [vmem:[#allocation2 + $0x70] sm:$0xff] %v1322
    %1373 = vst [vmem:[#allocation2 + $0x78] sm:$0xff] %v1323
    %1374 = vst [vmem:[#allocation2 + $0x80] sm:$0xff] %v1324
    %1375 = vst [vmem:[#allocation2 + $0x88] sm:$0xff] %v1325
    %1376 = vst [vmem:[#allocation2 + $0x90] sm:$0xff] %v1326
    %1377 = vst [vmem:[#allocation2 + $0x98] sm:$0xff] %v1327
    %1378 = vst [vmem:[#allocation2 + $0xa0] sm:$0xff] %v1328
    %1379 = vst [vmem:[#allocation2 + $0xa8] sm:$0xff] %v1329
    %1380 = vst [vmem:[#allocation2 + $0xb0] sm:$0xff] %v1330
    %1381 = vst [vmem:[#allocation2 + $0xb8] sm:$0xff] %v1331
    %1382 = vst [vmem:[#allocation2 + $0xc0] sm:$0xff] %v1332
    %1383 = vst [vmem:[#allocation2 + $0xc8] sm:$0xff] %v1333
    %1384 = vst [vmem:[#allocation2 + $0xd0] sm:$0xff] %v1334
    %1385 = vst [vmem:[#allocation2 + $0xd8] sm:$0xff] %v1335
    %1386 = vst [vmem:[#allocation2 + $0xe0] sm:$0xff] %v1336
    %1387 = vst [vmem:[#allocation2 + $0xe8] sm:$0xff] %v1337
    %1388 = vst [vmem:[#allocation2 + $0xf0] sm:$0xff] %v1338
    %1389 = vst [vmem:[#allocation2 + $0xf8] sm:$0xff] %v1339
    %1390 = vst [vmem:[#allocation2 + $0x100] sm:$0xff] %v1340
    %1391 = vst [vmem:[#allocation2 + $0x108] sm:$0xff] %v1341
    %1392 = vst [vmem:[#allocation2 + $0x110] sm:$0xff] %v1342
    %1393 = vst [vmem:[#allocation2 + $0x118] sm:$0xff] %v1343
    %1394 = vst [vmem:[#allocation2 + $0x120] sm:$0xff] %v1344
    %1395 = vst [vmem:[#allocation2 + $0x128] sm:$0xff] %v1345
    %1396 = vst [vmem:[#allocation2 + $0x130] sm:$0xff] %v1346
    %1397 = vst [vmem:[#allocation2 + $0x138] sm:$0xff] %v1347
    %1398 = vst [vmem:[#allocation2 + $0x140] sm:$0xff] %v1348
    %1399 = vst [vmem:[#allocation2 + $0x148] sm:$0xff] %v1349
    %1400 = vst [vmem:[#allocation2 + $0x150] sm:$0xff] %v1350
    %1401 = vst [vmem:[#allocation2 + $0x158] sm:$0xff] %v1351
    %1402 = vst [vmem:[#allocation2 + $0x160] sm:$0xff] %v1352
    %1403 = vst [vmem:[#allocation2 + $0x168] sm:$0xff] %v1353
    %1404 = vst [vmem:[#allocation2 + $0x170] sm:$0xff] %v1354
    %1405 = vst [vmem:[#allocation2 + $0x178] sm:$0xff] %v1355
    %1406 = vst [vmem:[#allocation2 + $0x180] sm:$0xff] %v1356
    %1407 = vst [vmem:[#allocation2 + $0x188] sm:$0xff] %v1357
    // Predicated region
    $region22: #{_fused_forward.1} parent=1 // pred_check
      _
    $region23: #{_fused_forward.1} parent=1 // pred_check_branch
      %1409 = sbr.rel (0) target = $region25
    $region24: #{_fused_forward.1} parent=1 // pred_region
      %s1411 = ssub.s32 6400, 6400
      %1412 = vsyncadd [#allocation3], %s1411
      %s1413 = sshll.u32 [#allocation2], 4
      %s1414 = int_to_ptr.vmem [resolvable:$true] %s1413
      %1419 = dma.vmem_to_hbm [thread:$0]  %s1414, 6400, %s5, [#allocation3], 128, 128, 8
    $region25: #{_fused_forward.1} parent=1 // pred_fallthru
      _
    // Predicated region
    $region26: #{_fused_forward.1} parent=1 // pred_check
      _
    $region27: #{_fused_forward.1} parent=1 // pred_check_branch
      %1421 = sbr.rel (0) target = $region29
    $region28: #{_fused_forward.1} parent=1 // pred_region
      %1422 = dma.done [#allocation3], 6400
    $region29: #{_fused_forward.1} parent=1 // pred_fallthru
      _
    %1423 = vsyncpa [#allocation3], 1

</llo_original>
